<compile_context>
chip_gen: v7x
topology: tpu7x:2x2x1
jax: 0.10.0
libtpu: 0.0.40
codegen_flags: <defaults>
</compile_context>

<pallas_src>
import functools

import jax
import jax.numpy as jnp
from jax.experimental import pallas as pl
from jax.experimental.pallas import tpu as pltpu

CP = 8  # channel padding (one sublane group) used for all tap-aligned packing


# ------------------------------ fused kernel --------------------------------

def _fused_upsample_kernel(x_ref, xp_ref, wt_ref, smat_ref, w1_ref, w2_ref,
                           mask_ref, par_ref, o_ref, ct_ref, *,
                           n_batch, c_out, h_out, w_out, pad, eps):
    co = c_out
    s_out = h_out * w_out
    lanes = n_batch * s_out
    # per-tap flat-lane shift for a 3x3 / pad=1 conv in row-major (p*W2+q) space
    taps = [(kh - 1) * w_out + (kw - 1) for kh in range(3) for kw in range(3)]

    masks = mask_ref[...]                        # (9, lanes) tap validity (per image)
    par = par_ref[...]                           # (CP, 8): bt b1 b2 g1 bb1 g2 bb2 -
    bt, b1, b2 = par[:, 0:1], par[:, 1:2], par[:, 2:3]
    g1, bb1, g2, bb2 = par[:, 3:4], par[:, 4:5], par[:, 5:6], par[:, 6:7]

    # Zero only the halo strips (aligned 128-lane stores); the interior is fully
    # rewritten by every conv3x3 call, so the halos stay zero for both convs.
    ct_ref[:, 0:pad] = jnp.zeros((9 * CP, pad), jnp.float32)
    ct_ref[:, pad + lanes:pad + lanes + pad] = jnp.zeros((9 * CP, pad), jnp.float32)

    def conv3x3(c_all, bias):
        # c_all: (9*CP, lanes) stacked per-tap channel contractions.
        # Spatial shift of each tap = aligned-sublane, shifted-lane read from the
        # padded scratch row; cross-image bleed at lane seams is masked out.
        ct_ref[:, pad:pad + lanes] = c_all       # lane-offset 128 -> unmasked store
        acc = jnp.zeros((CP, lanes), jnp.float32)
        for t in range(9):
            blk = ct_ref[t * CP:(t + 1) * CP,
                         pad + taps[t]:pad + taps[t] + lanes]
            acc = acc + blk * masks[t:t + 1, :]
        return acc + bias

    def bn_relu(o, g, bb):
        # training-mode batch statistics (biased variance), centered two-pass
        inv = 1.0 / float(lanes)
        mean = jnp.sum(o, axis=1, keepdims=True) * inv
        d = o - mean
        var = jnp.sum(d * d, axis=1, keepdims=True) * inv
        return jnp.maximum(d * (g * jax.lax.rsqrt(var + eps)) + bb, 0.0)

    # ---- ConvTranspose2d 2x2 / stride 2: phase GEMM + ONE fused scatter GEMM
    p = jnp.dot(wt_ref[...], x_ref[...],
                preferred_element_type=jnp.float32)              # (4*CP, N*s_in)
    p_r = jnp.concatenate([p[ab * CP:(ab + 1) * CP, :] for ab in range(4)],
                          axis=1).astype(jnp.bfloat16)           # (CP, 4*N*s_in)
    u = jnp.dot(p_r, smat_ref[...],
                preferred_element_type=jnp.float32) + bt         # (CP, lanes)

    # ---- conv1: skip-concat materialized once -> single K=8 GEMM
    cat = jnp.concatenate([xp_ref[...], u[:co, :]], axis=0)      # (c_skip+co, lanes)
    o1 = conv3x3(jnp.dot(w1_ref[...], cat,
                         preferred_element_type=jnp.float32), b1)
    a1 = bn_relu(o1, g1, bb1)

    # ---- conv2 + BN2 + ReLU, single lane-dense store
    o2 = conv3x3(jnp.dot(w2_ref[...], a1,
                         preferred_element_type=jnp.float32), b2)
    o_ref[...] = bn_relu(o2, g2, bb2)


# ----------------------- host-side packing (done once) ----------------------

def pack_params(params, in_h, in_w, n_batch):
    c_in, co = params["tconv_w"].shape[:2]
    c1_in = params["conv1_w"].shape[2]
    c_skip = c1_in - co
    h_out, w_out = 2 * in_h, 2 * in_w
    s_in, s_out = in_h * in_w, h_out * w_out
    assert co <= CP and c1_in <= CP and c_skip + co == c1_in

    # tconv weight (Cin, Co, 2, 2) -> (4*CP, Cin), rows ordered (a, b, oc[pad to 8])
    wt = jnp.transpose(params["tconv_w"], (2, 3, 1, 0))          # (2,2,Co,Cin)
    wt = jnp.pad(wt, ((0, 0), (0, 0), (0, CP - co), (0, 0))).reshape(4 * CP, c_in)

    # 3x3 conv weights HWIO (3,3,Ci,Co) -> (9*CP, CP): rows (kh,kw,oc[pad]), cols ci[pad]
    def pack_taps(w_hwio):
        _, _, ci, cout = w_hwio.shape
        w = jnp.transpose(w_hwio, (0, 1, 3, 2)).reshape(9, cout, ci)
        return jnp.pad(w, ((0, 0), (0, CP - cout), (0, CP - ci))).reshape(9 * CP, CP)

    w1p = pack_taps(params["conv1_w"])
    w2p = pack_taps(params["conv2_w"])

    # fused 2x2/stride-2 phase-scatter matrix (4*N*s_in, N*s_out), block-diagonal
    # over images; exact 0/1 so bf16 storage is lossless.
    hw = jnp.arange(s_in)
    h_idx, w_idx = hw // in_w, hw % in_w
    eye_n = jnp.eye(n_batch, dtype=jnp.float32)
    smat = jnp.concatenate(
        [jnp.kron(eye_n,
                  jax.nn.one_hot((2 * h_idx + a) * w_out + (2 * w_idx + b),
                                 s_out, dtype=jnp.float32))
         for a in range(2) for b in range(2)], axis=0).astype(jnp.bfloat16)

    # 3x3 "same" conv per-tap validity masks, tiled per image along lanes
    flat = jnp.arange(s_out)
    p_idx, q_idx = flat // w_out, flat % w_out
    mask_img = jnp.stack(
        [((p_idx + kh - 1 >= 0) & (p_idx + kh - 1 < h_out) &
          (q_idx + kw - 1 >= 0) & (q_idx + kw - 1 < w_out)).astype(jnp.float32)
         for kh in range(3) for kw in range(3)], axis=0)          # (9, s_out)
    masks = jnp.tile(mask_img, (1, n_batch))                      # (9, N*s_out)

    # all per-channel scalars packed into ONE (CP, 8) tile (single DMA):
    #   cols = [tconv_b, conv1_b, conv2_b, bn1_g, bn1_b, bn2_g, bn2_b, 0]
    def colpad(v, fill=0.0):
        v = jnp.asarray(v, jnp.float32)
        return jnp.concatenate([v, jnp.full((CP - v.shape[0],), fill, jnp.float32)])

    par = jnp.stack([colpad(params["tconv_b"]), colpad(params["conv1_b"]),
                     colpad(params["conv2_b"]),
                     colpad(params["bn1_g"], 1.0), colpad(params["bn1_b"]),
                     colpad(params["bn2_g"], 1.0), colpad(params["bn2_b"]),
                     jnp.zeros((CP,), jnp.float32)], axis=1)      # (CP, 8)

    return dict(wt=wt, w1=w1p, w2=w2p, smat=smat, masks=masks, par=par,
                dims=dict(c_in=c_in, c_skip=c_skip, c_out=co, n_batch=n_batch,
                          h_in=in_h, w_in=in_w, h_out=h_out, w_out=w_out))


# --------------------------------- forward ----------------------------------

def _full_spec(shape):
    nd = len(shape)
    return pl.BlockSpec(shape, lambda i, _nd=nd: (0,) * _nd)


def upsample_forward(packed, x_nchw, x_prev_nchw):
    d = packed["dims"]
    n, co, cs = d["n_batch"], d["c_out"], d["c_skip"]
    assert x_nchw.shape[0] == n and x_prev_nchw.shape[0] == n
    s_in = d["h_in"] * d["w_in"]
    s_out = d["h_out"] * d["w_out"]
    lanes = n * s_out
    pad = 128                                   # aligned halo (>= 3x3 tap reach)

    # batch-in-lanes layout: channels on sublanes, (image, spatial) on lanes.
    # These relayouts are a few KB; done outside the kernel.
    xb = x_nchw.reshape(n, d["c_in"], s_in).transpose(1, 0, 2).reshape(d["c_in"], n * s_in)
    xpb = x_prev_nchw.reshape(n, cs, s_out).transpose(1, 0, 2).reshape(cs, lanes)

    kern = functools.partial(
        _fused_upsample_kernel, n_batch=n, c_out=co,
        h_out=d["h_out"], w_out=d["w_out"], pad=pad, eps=1e-5)

    args = (xb, xpb, packed["wt"], packed["smat"], packed["w1"], packed["w2"],
            packed["masks"], packed["par"])

    out = pl.pallas_call(
        kern,
        out_shape=jax.ShapeDtypeStruct((CP, lanes), jnp.float32),
        grid=(1,),
        in_specs=[_full_spec(a.shape) for a in args],
        out_specs=pl.BlockSpec((CP, lanes), lambda i: (0, 0)),
        scratch_shapes=[pltpu.VMEM((9 * CP, lanes + 2 * pad), jnp.float32)],
        compiler_params=pltpu.CompilerParams(dimension_semantics=("arbitrary",)),
    )(*args)

    # (CP, N*s_out) lane-dense slab -> (N, Co, H2, W2); tiny relayout outside kernel
    out = out[:co].reshape(co, n, s_out).transpose(1, 0, 2)
    return out.reshape(n, co, d["h_out"], d["w_out"])


# --------------------------- pure-JAX reference ------------------------------

def reference_forward(params, x_nchw, x_prev_nchw):
    x = jnp.transpose(x_nchw, (0, 2, 3, 1))
    xp = jnp.transpose(x_prev_nchw, (0, 2, 3, 1))
    w, b = params["tconv_w"], params["tconv_b"]
    N, H, W, Cin = x.shape
    Co = w.shape[1]
    y = jnp.einsum("nhwi,iokl->nhkwlo", x, w).reshape(N, 2 * H, 2 * W, Co) + b
    y = jnp.concatenate([xp, y], axis=-1)

    def conv_ref(z, wk, bk):
        return jax.lax.conv_general_dilated(
            z, wk, (1, 1), "SAME",
            dimension_numbers=("NHWC", "HWIO", "NHWC")) + bk

    def bn_relu_ref(z, g, bb, eps=1e-5):
        m = jnp.mean(z, axis=(0, 1, 2))
        v = jnp.var(z, axis=(0, 1, 2))
        return jnp.maximum((z - m) / jnp.sqrt(v + eps) * g + bb, 0.0)

    y = bn_relu_ref(conv_ref(y, params["conv1_w"], params["conv1_b"]),
                    params["bn1_g"], params["bn1_b"])
    y = bn_relu_ref(conv_ref(y, params["conv2_w"], params["conv2_b"]),
                    params["bn2_g"], params["bn2_b"])
    return jnp.transpose(y, (0, 3, 1, 2))


# ----------------------------------- main ------------------------------------

if __name__ == "__main__":
    N, Cin, Cout, H, W = 2, 8, 4, 8, 8          # in_channels=8, out_channels=4, skip=True
    key = jax.random.PRNGKey(0)
    ks = jax.random.split(key, 12)

    params = {
        # ConvTranspose2d(in=8, out=4, k=2, s=2): weight (Cin, Cout, 2, 2), bias (Cout,)
        "tconv_w": 0.1 * jax.random.normal(ks[0], (Cin, Cout, 2, 2), jnp.float32),
        "tconv_b": 0.1 * jax.random.normal(ks[1], (Cout,), jnp.float32),
        # ConvBlock(8, 4): conv1 3x3 (HWIO), bn1, conv2 3x3, bn2
        "conv1_w": 0.1 * jax.random.normal(ks[2], (3, 3, Cin, Cout), jnp.float32),
        "conv1_b": 0.1 * jax.random.normal(ks[3], (Cout,), jnp.float32),
        "bn1_g": 1.0 + 0.1 * jax.random.normal(ks[4], (Cout,), jnp.float32),
        "bn1_b": 0.1 * jax.random.normal(ks[5], (Cout,), jnp.float32),
        "conv2_w": 0.1 * jax.random.normal(ks[6], (3, 3, Cout, Cout), jnp.float32),
        "conv2_b": 0.1 * jax.random.normal(ks[7], (Cout,), jnp.float32),
        "bn2_g": 1.0 + 0.1 * jax.random.normal(ks[8], (Cout,), jnp.float32),
        "bn2_b": 0.1 * jax.random.normal(ks[9], (Cout,), jnp.float32),
    }

    x = jax.random.normal(ks[10], (N, Cin, H, W), jnp.float32)                # NCHW
    x_prev = jax.random.normal(ks[11], (N, Cout, 2 * H, 2 * W), jnp.float32)  # skip input

    packed = pack_params(params, H, W, N)       # one-time host-side weight repacking

    fwd = jax.jit(lambda a, b: upsample_forward(packed, a, b))
    out = jax.block_until_ready(fwd(x, x_prev))
    assert out.shape == (N, Cout, 2 * H, 2 * W), out.shape

    ref = jax.block_until_ready(reference_forward(params, x, x_prev))
    # Tolerance covers the bf16 scatter GEMM and reduced-precision MXU passes
    # used by both the Pallas dots and the XLA reference conv on TPU.
    assert jnp.allclose(out, ref, atol=1e-2, rtol=1e-2), float(jnp.max(jnp.abs(out - ref)))

    print("KERNEL_OK")
</pallas_src>

<mosaic_0001>
module attributes {stable_mosaic.version = 11 : i64} {
  func.func @_fused_upsample_kernel(%arg0: i32, %arg1: memref<8x128xf32, #tpu.memory_space<vmem>>, %arg2: memref<4x512xf32, #tpu.memory_space<vmem>>, %arg3: memref<32x8xf32, #tpu.memory_space<vmem>>, %arg4: memref<512x512xbf16, #tpu.memory_space<vmem>>, %arg5: memref<72x8xf32, #tpu.memory_space<vmem>>, %arg6: memref<72x8xf32, #tpu.memory_space<vmem>>, %arg7: memref<9x512xf32, #tpu.memory_space<vmem>>, %arg8: memref<8x8xf32, #tpu.memory_space<vmem>>, %arg9: memref<8x512xf32, #tpu.memory_space<vmem>>, %arg10: memref<72x768xf32, #tpu.memory_space<vmem>>) attributes {dimension_semantics = [#tpu.dimension_semantics<arbitrary>], iteration_bounds = array<i64: 1>, scalar_prefetch = 0 : i64, scratch_operands = 1 : i64, tpu.core_type = #tpu.core_type<tc>, window_params = [{pipeline_mode = #tpu.pipeline_mode<synchronous>, transform_indices = @transform_0, window_bounds = array<i64: 8, 128>}, {pipeline_mode = #tpu.pipeline_mode<synchronous>, transform_indices = @transform_1, window_bounds = array<i64: 4, 512>}, {pipeline_mode = #tpu.pipeline_mode<synchronous>, transform_indices = @transform_2, window_bounds = array<i64: 32, 8>}, {pipeline_mode = #tpu.pipeline_mode<synchronous>, transform_indices = @transform_3, window_bounds = array<i64: 512, 512>}, {pipeline_mode = #tpu.pipeline_mode<synchronous>, transform_indices = @transform_4, window_bounds = array<i64: 72, 8>}, {pipeline_mode = #tpu.pipeline_mode<synchronous>, transform_indices = @transform_5, window_bounds = array<i64: 72, 8>}, {pipeline_mode = #tpu.pipeline_mode<synchronous>, transform_indices = @transform_6, window_bounds = array<i64: 9, 512>}, {pipeline_mode = #tpu.pipeline_mode<synchronous>, transform_indices = @transform_7, window_bounds = array<i64: 8, 8>}, {pipeline_mode = #tpu.pipeline_mode<synchronous>, transform_indices = @transform_8, window_bounds = array<i64: 8, 512>}]} {
    %c0 = arith.constant 0 : index
    %c0_0 = arith.constant 0 : index
    %0 = vector.load %arg7[%c0, %c0_0] : memref<9x512xf32, #tpu.memory_space<vmem>>, vector<9x512xf32>
    %c0_1 = arith.constant 0 : index
    %c0_2 = arith.constant 0 : index
    %1 = vector.load %arg8[%c0_1, %c0_2] : memref<8x8xf32, #tpu.memory_space<vmem>>, vector<8x8xf32>
    %2 = vector.extract_strided_slice %1 {offsets = [0, 0], sizes = [8, 1], strides = [1, 1]} : vector<8x8xf32> to vector<8x1xf32>
    %3 = vector.extract_strided_slice %1 {offsets = [0, 1], sizes = [8, 1], strides = [1, 1]} : vector<8x8xf32> to vector<8x1xf32>
    %4 = vector.extract_strided_slice %1 {offsets = [0, 2], sizes = [8, 1], strides = [1, 1]} : vector<8x8xf32> to vector<8x1xf32>
    %5 = vector.extract_strided_slice %1 {offsets = [0, 3], sizes = [8, 1], strides = [1, 1]} : vector<8x8xf32> to vector<8x1xf32>
    %6 = vector.extract_strided_slice %1 {offsets = [0, 4], sizes = [8, 1], strides = [1, 1]} : vector<8x8xf32> to vector<8x1xf32>
    %7 = vector.extract_strided_slice %1 {offsets = [0, 5], sizes = [8, 1], strides = [1, 1]} : vector<8x8xf32> to vector<8x1xf32>
    %8 = vector.extract_strided_slice %1 {offsets = [0, 6], sizes = [8, 1], strides = [1, 1]} : vector<8x8xf32> to vector<8x1xf32>
    %cst = arith.constant 0.000000e+00 : f32
    %9 = vector.broadcast %cst : f32 to vector<72x128xf32>
    %c0_3 = arith.constant 0 : index
    %c0_4 = arith.constant 0 : index
    %10 = vector.load %arg10[%c0_3, %c0_4] : memref<72x768xf32, #tpu.memory_space<vmem>>, vector<72x128xf32>
    tpu.vector_store %arg10[%c0_3, %c0_4], %9 {strides = array<i32>} : memref<72x768xf32, #tpu.memory_space<vmem>>, vector<72x128xf32>,
    %cst_5 = arith.constant 0.000000e+00 : f32
    %11 = vector.broadcast %cst_5 : f32 to vector<72x128xf32>
    %c0_6 = arith.constant 0 : index
    %c640 = arith.constant 640 : index
    %12 = vector.load %arg10[%c0_6, %c640] : memref<72x768xf32, #tpu.memory_space<vmem>>, vector<72x128xf32>
    tpu.vector_store %arg10[%c0_6, %c640], %11 {strides = array<i32>} : memref<72x768xf32, #tpu.memory_space<vmem>>, vector<72x128xf32>,
    %c0_7 = arith.constant 0 : index
    %c0_8 = arith.constant 0 : index
    %13 = vector.load %arg3[%c0_7, %c0_8] : memref<32x8xf32, #tpu.memory_space<vmem>>, vector<32x8xf32>
    %c0_9 = arith.constant 0 : index
    %c0_10 = arith.constant 0 : index
    %14 = vector.load %arg1[%c0_9, %c0_10] : memref<8x128xf32, #tpu.memory_space<vmem>>, vector<8x128xf32>
    %cst_11 = arith.constant dense<0.000000e+00> : vector<32x128xf32>
    %15 = tpu.matmul %13, %14, %cst_11 {dimension_numbers = #tpu.dot_dimension_numbers<[1], [0], [0], [1], [0, 0, 1, 1], [], []>} : vector<32x8xf32>, vector<8x128xf32>, vector<32x128xf32> -> vector<32x128xf32>
    %16 = vector.extract_strided_slice %15 {offsets = [0, 0], sizes = [8, 128], strides = [1, 1]} : vector<32x128xf32> to vector<8x128xf32>
    %17 = vector.extract_strided_slice %15 {offsets = [8, 0], sizes = [8, 128], strides = [1, 1]} : vector<32x128xf32> to vector<8x128xf32>
    %18 = vector.extract_strided_slice %15 {offsets = [16, 0], sizes = [8, 128], strides = [1, 1]} : vector<32x128xf32> to vector<8x128xf32>
    %19 = vector.extract_strided_slice %15 {offsets = [24, 0], sizes = [8, 128], strides = [1, 1]} : vector<32x128xf32> to vector<8x128xf32>
    %20 = tpu.concatenate %16, %17, %18, %19 in 1 : vector<8x128xf32>, vector<8x128xf32>, vector<8x128xf32>, vector<8x128xf32> -> vector<8x512xf32>
    %21 = arith.truncf %20 : vector<8x512xf32> to vector<8x512xbf16>
    %c0_12 = arith.constant 0 : index
    %c0_13 = arith.constant 0 : index
    %22 = vector.load %arg4[%c0_12, %c0_13] : memref<512x512xbf16, #tpu.memory_space<vmem>>, vector<512x512xbf16>
    %cst_14 = arith.constant dense<0.000000e+00> : vector<8x512xf32>
    %23 = tpu.matmul %21, %22, %cst_14 {dimension_numbers = #tpu.dot_dimension_numbers<[1], [0], [0], [1], [0, 0, 1, 1], [], []>} : vector<8x512xbf16>, vector<512x512xbf16>, vector<8x512xf32> -> vector<8x512xf32>
    %24 = vector.broadcast %2 : vector<8x1xf32> to vector<8x512xf32>
    %25 = arith.addf %23, %24 : vector<8x512xf32>
    %c0_15 = arith.constant 0 : index
    %c0_16 = arith.constant 0 : index
    %26 = vector.load %arg2[%c0_15, %c0_16] : memref<4x512xf32, #tpu.memory_space<vmem>>, vector<4x512xf32>
    %27 = vector.extract_strided_slice %25 {offsets = [0, 0], sizes = [4, 512], strides = [1, 1]} : vector<8x512xf32> to vector<4x512xf32>
    %28 = tpu.concatenate %26, %27 in 0 : vector<4x512xf32>, vector<4x512xf32> -> vector<8x512xf32>
    %c0_17 = arith.constant 0 : index
    %c0_18 = arith.constant 0 : index
    %29 = vector.load %arg5[%c0_17, %c0_18] : memref<72x8xf32, #tpu.memory_space<vmem>>, vector<72x8xf32>
    %cst_19 = arith.constant dense<0.000000e+00> : vector<72x512xf32>
    %30 = tpu.matmul %29, %28, %cst_19 {dimension_numbers = #tpu.dot_dimension_numbers<[1], [0], [0], [1], [0, 0, 1, 1], [], []>} : vector<72x8xf32>, vector<8x512xf32>, vector<72x512xf32> -> vector<72x512xf32>
    %c0_20 = arith.constant 0 : index
    %c128 = arith.constant 128 : index
    %31 = vector.load %arg10[%c0_20, %c128] : memref<72x768xf32, #tpu.memory_space<vmem>>, vector<72x512xf32>
    tpu.vector_store %arg10[%c0_20, %c128], %30 {strides = array<i32>} : memref<72x768xf32, #tpu.memory_space<vmem>>, vector<72x512xf32>,
    %cst_21 = arith.constant 0.000000e+00 : f32
    %32 = vector.broadcast %cst_21 : f32 to vector<8x512xf32>
    %c0_22 = arith.constant 0 : index
    %c111 = arith.constant 111 : index
    %33 = vector.load %arg10[%c0_22, %c111] : memref<72x768xf32, #tpu.memory_space<vmem>>, vector<8x512xf32>
    %34 = vector.extract_strided_slice %0 {offsets = [0, 0], sizes = [1, 512], strides = [1, 1]} : vector<9x512xf32> to vector<1x512xf32>
    %35 = vector.broadcast %34 : vector<1x512xf32> to vector<8x512xf32>
    %36 = arith.mulf %33, %35 : vector<8x512xf32>
    %37 = arith.addf %32, %36 : vector<8x512xf32>
    %c8 = arith.constant 8 : index
    %c112 = arith.constant 112 : index
    %38 = vector.load %arg10[%c8, %c112] : memref<72x768xf32, #tpu.memory_space<vmem>>, vector<8x512xf32>
    %39 = vector.extract_strided_slice %0 {offsets = [1, 0], sizes = [1, 512], strides = [1, 1]} : vector<9x512xf32> to vector<1x512xf32>
    %40 = vector.broadcast %39 : vector<1x512xf32> to vector<8x512xf32>
    %41 = arith.mulf %38, %40 : vector<8x512xf32>
    %42 = arith.addf %37, %41 : vector<8x512xf32>
    %c16 = arith.constant 16 : index
    %c113 = arith.constant 113 : index
    %43 = vector.load %arg10[%c16, %c113] : memref<72x768xf32, #tpu.memory_space<vmem>>, vector<8x512xf32>
    %44 = vector.extract_strided_slice %0 {offsets = [2, 0], sizes = [1, 512], strides = [1, 1]} : vector<9x512xf32> to vector<1x512xf32>
    %45 = vector.broadcast %44 : vector<1x512xf32> to vector<8x512xf32>
    %46 = arith.mulf %43, %45 : vector<8x512xf32>
    %47 = arith.addf %42, %46 : vector<8x512xf32>
    %c24 = arith.constant 24 : index
    %c127 = arith.constant 127 : index
    %48 = vector.load %arg10[%c24, %c127] : memref<72x768xf32, #tpu.memory_space<vmem>>, vector<8x512xf32>
    %49 = vector.extract_strided_slice %0 {offsets = [3, 0], sizes = [1, 512], strides = [1, 1]} : vector<9x512xf32> to vector<1x512xf32>
    %50 = vector.broadcast %49 : vector<1x512xf32> to vector<8x512xf32>
    %51 = arith.mulf %48, %50 : vector<8x512xf32>
    %52 = arith.addf %47, %51 : vector<8x512xf32>
    %c32 = arith.constant 32 : index
    %c128_23 = arith.constant 128 : index
    %53 = vector.load %arg10[%c32, %c128_23] : memref<72x768xf32, #tpu.memory_space<vmem>>, vector<8x512xf32>
    %54 = vector.extract_strided_slice %0 {offsets = [4, 0], sizes = [1, 512], strides = [1, 1]} : vector<9x512xf32> to vector<1x512xf32>
    %55 = vector.broadcast %54 : vector<1x512xf32> to vector<8x512xf32>
    %56 = arith.mulf %53, %55 : vector<8x512xf32>
    %57 = arith.addf %52, %56 : vector<8x512xf32>
    %c40 = arith.constant 40 : index
    %c129 = arith.constant 129 : index
    %58 = vector.load %arg10[%c40, %c129] : memref<72x768xf32, #tpu.memory_space<vmem>>, vector<8x512xf32>
    %59 = vector.extract_strided_slice %0 {offsets = [5, 0], sizes = [1, 512], strides = [1, 1]} : vector<9x512xf32> to vector<1x512xf32>
    %60 = vector.broadcast %59 : vector<1x512xf32> to vector<8x512xf32>
    %61 = arith.mulf %58, %60 : vector<8x512xf32>
    %62 = arith.addf %57, %61 : vector<8x512xf32>
    %c48 = arith.constant 48 : index
    %c143 = arith.constant 143 : index
    %63 = vector.load %arg10[%c48, %c143] : memref<72x768xf32, #tpu.memory_space<vmem>>, vector<8x512xf32>
    %64 = vector.extract_strided_slice %0 {offsets = [6, 0], sizes = [1, 512], strides = [1, 1]} : vector<9x512xf32> to vector<1x512xf32>
    %65 = vector.broadcast %64 : vector<1x512xf32> to vector<8x512xf32>
    %66 = arith.mulf %63, %65 : vector<8x512xf32>
    %67 = arith.addf %62, %66 : vector<8x512xf32>
    %c56 = arith.constant 56 : index
    %c144 = arith.constant 144 : index
    %68 = vector.load %arg10[%c56, %c144] : memref<72x768xf32, #tpu.memory_space<vmem>>, vector<8x512xf32>
    %69 = vector.extract_strided_slice %0 {offsets = [7, 0], sizes = [1, 512], strides = [1, 1]} : vector<9x512xf32> to vector<1x512xf32>
    %70 = vector.broadcast %69 : vector<1x512xf32> to vector<8x512xf32>
    %71 = arith.mulf %68, %70 : vector<8x512xf32>
    %72 = arith.addf %67, %71 : vector<8x512xf32>
    %c64 = arith.constant 64 : index
    %c145 = arith.constant 145 : index
    %73 = vector.load %arg10[%c64, %c145] : memref<72x768xf32, #tpu.memory_space<vmem>>, vector<8x512xf32>
    %74 = vector.extract_strided_slice %0 {offsets = [8, 0], sizes = [1, 512], strides = [1, 1]} : vector<9x512xf32> to vector<1x512xf32>
    %75 = vector.broadcast %74 : vector<1x512xf32> to vector<8x512xf32>
    %76 = arith.mulf %73, %75 : vector<8x512xf32>
    %77 = arith.addf %72, %76 : vector<8x512xf32>
    %78 = vector.broadcast %3 : vector<8x1xf32> to vector<8x512xf32>
    %79 = arith.addf %77, %78 : vector<8x512xf32>
    %cst_24 = arith.constant dense<0.000000e+00> : vector<8xf32>
    %80 = vector.multi_reduction <add>, %79, %cst_24 [1] : vector<8x512xf32> to vector<8xf32>
    %81 = vector.shape_cast %80 : vector<8xf32> to vector<8x1xf32>
    %cst_25 = arith.constant 0.001953125 : f32
    %82 = vector.broadcast %cst_25 : f32 to vector<8x1xf32>
    %83 = arith.mulf %81, %82 : vector<8x1xf32>
    %84 = vector.broadcast %83 : vector<8x1xf32> to vector<8x512xf32>
    %85 = arith.subf %79, %84 : vector<8x512xf32>
    %86 = arith.mulf %85, %85 : vector<8x512xf32>
    %cst_26 = arith.constant dense<0.000000e+00> : vector<8xf32>
    %87 = vector.multi_reduction <add>, %86, %cst_26 [1] : vector<8x512xf32> to vector<8xf32>
    %88 = vector.shape_cast %87 : vector<8xf32> to vector<8x1xf32>
    %cst_27 = arith.constant 0.001953125 : f32
    %89 = vector.broadcast %cst_27 : f32 to vector<8x1xf32>
    %90 = arith.mulf %88, %89 : vector<8x1xf32>
    %cst_28 = arith.constant 9.99999974E-6 : f32
    %91 = vector.broadcast %cst_28 : f32 to vector<8x1xf32>
    %92 = arith.addf %90, %91 : vector<8x1xf32>
    %93 = math.rsqrt %92 : vector<8x1xf32>
    %94 = arith.mulf %5, %93 : vector<8x1xf32>
    %95 = vector.broadcast %94 : vector<8x1xf32> to vector<8x512xf32>
    %96 = arith.mulf %85, %95 : vector<8x512xf32>
    %97 = vector.broadcast %6 : vector<8x1xf32> to vector<8x512xf32>
    %98 = arith.addf %96, %97 : vector<8x512xf32>
    %cst_29 = arith.constant 0.000000e+00 : f32
    %99 = vector.broadcast %cst_29 : f32 to vector<8x512xf32>
    %100 = arith.maximumf %98, %99 : vector<8x512xf32>
    %c0_30 = arith.constant 0 : index
    %c0_31 = arith.constant 0 : index
    %101 = vector.load %arg6[%c0_30, %c0_31] : memref<72x8xf32, #tpu.memory_space<vmem>>, vector<72x8xf32>
    %cst_32 = arith.constant dense<0.000000e+00> : vector<72x512xf32>
    %102 = tpu.matmul %101, %100, %cst_32 {dimension_numbers = #tpu.dot_dimension_numbers<[1], [0], [0], [1], [0, 0, 1, 1], [], []>} : vector<72x8xf32>, vector<8x512xf32>, vector<72x512xf32> -> vector<72x512xf32>
    %c0_33 = arith.constant 0 : index
    %c128_34 = arith.constant 128 : index
    %103 = vector.load %arg10[%c0_33, %c128_34] : memref<72x768xf32, #tpu.memory_space<vmem>>, vector<72x512xf32>
    tpu.vector_store %arg10[%c0_33, %c128_34], %102 {strides = array<i32>} : memref<72x768xf32, #tpu.memory_space<vmem>>, vector<72x512xf32>,
    %cst_35 = arith.constant 0.000000e+00 : f32
    %104 = vector.broadcast %cst_35 : f32 to vector<8x512xf32>
    %c0_36 = arith.constant 0 : index
    %c111_37 = arith.constant 111 : index
    %105 = vector.load %arg10[%c0_36, %c111_37] : memref<72x768xf32, #tpu.memory_space<vmem>>, vector<8x512xf32>
    %106 = vector.extract_strided_slice %0 {offsets = [0, 0], sizes = [1, 512], strides = [1, 1]} : vector<9x512xf32> to vector<1x512xf32>
    %107 = vector.broadcast %106 : vector<1x512xf32> to vector<8x512xf32>
    %108 = arith.mulf %105, %107 : vector<8x512xf32>
    %109 = arith.addf %104, %108 : vector<8x512xf32>
    %c8_38 = arith.constant 8 : index
    %c112_39 = arith.constant 112 : index
    %110 = vector.load %arg10[%c8_38, %c112_39] : memref<72x768xf32, #tpu.memory_space<vmem>>, vector<8x512xf32>
    %111 = vector.extract_strided_slice %0 {offsets = [1, 0], sizes = [1, 512], strides = [1, 1]} : vector<9x512xf32> to vector<1x512xf32>
    %112 = vector.broadcast %111 : vector<1x512xf32> to vector<8x512xf32>
    %113 = arith.mulf %110, %112 : vector<8x512xf32>
    %114 = arith.addf %109, %113 : vector<8x512xf32>
    %c16_40 = arith.constant 16 : index
    %c113_41 = arith.constant 113 : index
    %115 = vector.load %arg10[%c16_40, %c113_41] : memref<72x768xf32, #tpu.memory_space<vmem>>, vector<8x512xf32>
    %116 = vector.extract_strided_slice %0 {offsets = [2, 0], sizes = [1, 512], strides = [1, 1]} : vector<9x512xf32> to vector<1x512xf32>
    %117 = vector.broadcast %116 : vector<1x512xf32> to vector<8x512xf32>
    %118 = arith.mulf %115, %117 : vector<8x512xf32>
    %119 = arith.addf %114, %118 : vector<8x512xf32>
    %c24_42 = arith.constant 24 : index
    %c127_43 = arith.constant 127 : index
    %120 = vector.load %arg10[%c24_42, %c127_43] : memref<72x768xf32, #tpu.memory_space<vmem>>, vector<8x512xf32>
    %121 = vector.extract_strided_slice %0 {offsets = [3, 0], sizes = [1, 512], strides = [1, 1]} : vector<9x512xf32> to vector<1x512xf32>
    %122 = vector.broadcast %121 : vector<1x512xf32> to vector<8x512xf32>
    %123 = arith.mulf %120, %122 : vector<8x512xf32>
    %124 = arith.addf %119, %123 : vector<8x512xf32>
    %c32_44 = arith.constant 32 : index
    %c128_45 = arith.constant 128 : index
    %125 = vector.load %arg10[%c32_44, %c128_45] : memref<72x768xf32, #tpu.memory_space<vmem>>, vector<8x512xf32>
    %126 = vector.extract_strided_slice %0 {offsets = [4, 0], sizes = [1, 512], strides = [1, 1]} : vector<9x512xf32> to vector<1x512xf32>
    %127 = vector.broadcast %126 : vector<1x512xf32> to vector<8x512xf32>
    %128 = arith.mulf %125, %127 : vector<8x512xf32>
    %129 = arith.addf %124, %128 : vector<8x512xf32>
    %c40_46 = arith.constant 40 : index
    %c129_47 = arith.constant 129 : index
    %130 = vector.load %arg10[%c40_46, %c129_47] : memref<72x768xf32, #tpu.memory_space<vmem>>, vector<8x512xf32>
    %131 = vector.extract_strided_slice %0 {offsets = [5, 0], sizes = [1, 512], strides = [1, 1]} : vector<9x512xf32> to vector<1x512xf32>
    %132 = vector.broadcast %131 : vector<1x512xf32> to vector<8x512xf32>
    %133 = arith.mulf %130, %132 : vector<8x512xf32>
    %134 = arith.addf %129, %133 : vector<8x512xf32>
    %c48_48 = arith.constant 48 : index
    %c143_49 = arith.constant 143 : index
    %135 = vector.load %arg10[%c48_48, %c143_49] : memref<72x768xf32, #tpu.memory_space<vmem>>, vector<8x512xf32>
    %136 = vector.extract_strided_slice %0 {offsets = [6, 0], sizes = [1, 512], strides = [1, 1]} : vector<9x512xf32> to vector<1x512xf32>
    %137 = vector.broadcast %136 : vector<1x512xf32> to vector<8x512xf32>
    %138 = arith.mulf %135, %137 : vector<8x512xf32>
    %139 = arith.addf %134, %138 : vector<8x512xf32>
    %c56_50 = arith.constant 56 : index
    %c144_51 = arith.constant 144 : index
    %140 = vector.load %arg10[%c56_50, %c144_51] : memref<72x768xf32, #tpu.memory_space<vmem>>, vector<8x512xf32>
    %141 = vector.extract_strided_slice %0 {offsets = [7, 0], sizes = [1, 512], strides = [1, 1]} : vector<9x512xf32> to vector<1x512xf32>
    %142 = vector.broadcast %141 : vector<1x512xf32> to vector<8x512xf32>
    %143 = arith.mulf %140, %142 : vector<8x512xf32>
    %144 = arith.addf %139, %143 : vector<8x512xf32>
    %c64_52 = arith.constant 64 : index
    %c145_53 = arith.constant 145 : index
    %145 = vector.load %arg10[%c64_52, %c145_53] : memref<72x768xf32, #tpu.memory_space<vmem>>, vector<8x512xf32>
    %146 = vector.extract_strided_slice %0 {offsets = [8, 0], sizes = [1, 512], strides = [1, 1]} : vector<9x512xf32> to vector<1x512xf32>
    %147 = vector.broadcast %146 : vector<1x512xf32> to vector<8x512xf32>
    %148 = arith.mulf %145, %147 : vector<8x512xf32>
    %149 = arith.addf %144, %148 : vector<8x512xf32>
    %150 = vector.broadcast %4 : vector<8x1xf32> to vector<8x512xf32>
    %151 = arith.addf %149, %150 : vector<8x512xf32>
    %cst_54 = arith.constant dense<0.000000e+00> : vector<8xf32>
    %152 = vector.multi_reduction <add>, %151, %cst_54 [1] : vector<8x512xf32> to vector<8xf32>
    %153 = vector.shape_cast %152 : vector<8xf32> to vector<8x1xf32>
    %cst_55 = arith.constant 0.001953125 : f32
    %154 = vector.broadcast %cst_55 : f32 to vector<8x1xf32>
    %155 = arith.mulf %153, %154 : vector<8x1xf32>
    %156 = vector.broadcast %155 : vector<8x1xf32> to vector<8x512xf32>
    %157 = arith.subf %151, %156 : vector<8x512xf32>
    %158 = arith.mulf %157, %157 : vector<8x512xf32>
    %cst_56 = arith.constant dense<0.000000e+00> : vector<8xf32>
    %159 = vector.multi_reduction <add>, %158, %cst_56 [1] : vector<8x512xf32> to vector<8xf32>
    %160 = vector.shape_cast %159 : vector<8xf32> to vector<8x1xf32>
    %cst_57 = arith.constant 0.001953125 : f32
    %161 = vector.broadcast %cst_57 : f32 to vector<8x1xf32>
    %162 = arith.mulf %160, %161 : vector<8x1xf32>
    %cst_58 = arith.constant 9.99999974E-6 : f32
    %163 = vector.broadcast %cst_58 : f32 to vector<8x1xf32>
    %164 = arith.addf %162, %163 : vector<8x1xf32>
    %165 = math.rsqrt %164 : vector<8x1xf32>
    %166 = arith.mulf %7, %165 : vector<8x1xf32>
    %167 = vector.broadcast %166 : vector<8x1xf32> to vector<8x512xf32>
    %168 = arith.mulf %157, %167 : vector<8x512xf32>
    %169 = vector.broadcast %8 : vector<8x1xf32> to vector<8x512xf32>
    %170 = arith.addf %168, %169 : vector<8x512xf32>
    %cst_59 = arith.constant 0.000000e+00 : f32
    %171 = vector.broadcast %cst_59 : f32 to vector<8x512xf32>
    %172 = arith.maximumf %170, %171 : vector<8x512xf32>
    %c0_60 = arith.constant 0 : index
    %c0_61 = arith.constant 0 : index
    %173 = vector.load %arg9[%c0_60, %c0_61] : memref<8x512xf32, #tpu.memory_space<vmem>>, vector<8x512xf32>
    tpu.vector_store %arg9[%c0_60, %c0_61], %172 {strides = array<i32>} : memref<8x512xf32, #tpu.memory_space<vmem>>, vector<8x512xf32>,
    return
  }
  func.func @transform_0(%arg0: i32) -> (i32, i32) {
    %c0_i32 = arith.constant 0 : i32
    %c0_i32_0 = arith.constant 0 : i32
    %c0_i32_1 = arith.constant 0 : i32
    return %c0_i32, %c0_i32_0 : i32, i32
  }
  func.func @transform_1(%arg0: i32) -> (i32, i32) {
    %c0_i32 = arith.constant 0 : i32
    %c0_i32_0 = arith.constant 0 : i32
    %c0_i32_1 = arith.constant 0 : i32
    return %c0_i32, %c0_i32_0 : i32, i32
  }
  func.func @transform_2(%arg0: i32) -> (i32, i32) {
    %c0_i32 = arith.constant 0 : i32
    %c0_i32_0 = arith.constant 0 : i32
    %c0_i32_1 = arith.constant 0 : i32
    return %c0_i32, %c0_i32_0 : i32, i32
  }
  func.func @transform_3(%arg0: i32) -> (i32, i32) {
    %c0_i32 = arith.constant 0 : i32
    %c0_i32_0 = arith.constant 0 : i32
    %c0_i32_1 = arith.constant 0 : i32
    return %c0_i32, %c0_i32_0 : i32, i32
  }
  func.func @transform_4(%arg0: i32) -> (i32, i32) {
    %c0_i32 = arith.constant 0 : i32
    %c0_i32_0 = arith.constant 0 : i32
    %c0_i32_1 = arith.constant 0 : i32
    return %c0_i32, %c0_i32_0 : i32, i32
  }
  func.func @transform_5(%arg0: i32) -> (i32, i32) {
    %c0_i32 = arith.constant 0 : i32
    %c0_i32_0 = arith.constant 0 : i32
    %c0_i32_1 = arith.constant 0 : i32
    return %c0_i32, %c0_i32_0 : i32, i32
  }
  func.func @transform_6(%arg0: i32) -> (i32, i32) {
    %c0_i32 = arith.constant 0 : i32
    %c0_i32_0 = arith.constant 0 : i32
    %c0_i32_1 = arith.constant 0 : i32
    return %c0_i32, %c0_i32_0 : i32, i32
  }
  func.func @transform_7(%arg0: i32) -> (i32, i32) {
    %c0_i32 = arith.constant 0 : i32
    %c0_i32_0 = arith.constant 0 : i32
    %c0_i32_1 = arith.constant 0 : i32
    return %c0_i32, %c0_i32_0 : i32, i32
  }
  func.func @transform_8(%arg0: i32) -> (i32, i32) {
    %c0_i32 = arith.constant 0 : i32
    %c0_i32_0 = arith.constant 0 : i32
    %c0_i32_1 = arith.constant 0 : i32
    return %c0_i32, %c0_i32_0 : i32, i32
  }
}

</mosaic_0001>

<llo_original>
// kernel: _lambda_.1
$region0: #{_lambda_.1}
  #allocation0 [shape = 'u32[]', space=smem, size = 0x4, offset = 0x4, fixed_abs, tag = 'smem constant byte address 0x4 - core index']
  #allocation1 [shape = 'u32[144,128]{1,0:T(1,128)}', space=vmem, size = 0x12000, scoped, tag = 'internal scratch']
  #allocation2 [shape = 'f32[72,768]{1,0:T(8,128)}', space=vmem, size = 0x36000, scoped, tag = 'scratch operand']
  %s0 = inlined_call_operand.vmem [shape: f32[8,128], index: 0, kind: input, shape index: {}]
  %s1 = inlined_call_operand.vmem [shape: f32[4,512], index: 1, kind: input, shape index: {}]
  %s2 = inlined_call_operand.vmem [shape: f32[32,8], index: 2, kind: input, shape index: {}]
  %s3 = inlined_call_operand.vmem [shape: bf16[512,512], index: 3, kind: input, shape index: {}]
  %s4 = inlined_call_operand.vmem [shape: f32[72,8], index: 4, kind: input, shape index: {}]
  %s5 = inlined_call_operand.vmem [shape: f32[72,8], index: 5, kind: input, shape index: {}]
  %s6 = inlined_call_operand.vmem [shape: f32[9,512], index: 6, kind: input, shape index: {}]
  %s7 = inlined_call_operand.vmem [shape: f32[8,8], index: 7, kind: input, shape index: {}]
  %s8 = inlined_call_operand.vmem [shape: f32[8,512], index: 8, kind: output, shape index: {}]
  %s9 = sld [smem:[#allocation0]]
  $region42: #{_lambda_.1} parent=0
    _
  %s11 = ssub.s32 1, %s9
  %s12 = scalar_select 0, %s11, %s9
  // Predicated region
  $region2: #{_lambda_.1} parent=0 // pred_check
    _
  $region3: #{_lambda_.1} parent=0 // pred_check_branch
    %14 = sbr.rel (0) target = $region5
  $region4: #{_lambda_.1} parent=0 // pred_region
    _
  $region5: #{_lambda_.1} parent=0 // pred_fallthru
    _
  // Predicated region
  $region6: #{_lambda_.1} parent=0 // pred_check
    _
  $region7: #{_lambda_.1} parent=0 // pred_check_branch
    %16 = sbr.rel (0) target = $region9
  $region8: #{_lambda_.1} parent=0 // pred_region
    _
  $region9: #{_lambda_.1} parent=0 // pred_fallthru
    _
  // Predicated region
  $region10: #{_lambda_.1} parent=0 // pred_check
    _
  $region11: #{_lambda_.1} parent=0 // pred_check_branch
    %18 = sbr.rel (0) target = $region13
  $region12: #{_lambda_.1} parent=0 // pred_region
    _
  $region13: #{_lambda_.1} parent=0 // pred_fallthru
    _
  // Predicated region
  $region14: #{_lambda_.1} parent=0 // pred_check
    _
  $region15: #{_lambda_.1} parent=0 // pred_check_branch
    %20 = sbr.rel (0) target = $region17
  $region16: #{_lambda_.1} parent=0 // pred_region
    _
  $region17: #{_lambda_.1} parent=0 // pred_fallthru
    _
  // Predicated region
  $region18: #{_lambda_.1} parent=0 // pred_check
    _
  $region19: #{_lambda_.1} parent=0 // pred_check_branch
    %22 = sbr.rel (0) target = $region21
  $region20: #{_lambda_.1} parent=0 // pred_region
    _
  $region21: #{_lambda_.1} parent=0 // pred_fallthru
    _
  // Predicated region
  $region22: #{_lambda_.1} parent=0 // pred_check
    _
  $region23: #{_lambda_.1} parent=0 // pred_check_branch
    %24 = sbr.rel (0) target = $region25
  $region24: #{_lambda_.1} parent=0 // pred_region
    _
  $region25: #{_lambda_.1} parent=0 // pred_fallthru
    _
  // Predicated region
  $region26: #{_lambda_.1} parent=0 // pred_check
    _
  $region27: #{_lambda_.1} parent=0 // pred_check_branch
    %26 = sbr.rel (0) target = $region29
  $region28: #{_lambda_.1} parent=0 // pred_region
    _
  $region29: #{_lambda_.1} parent=0 // pred_fallthru
    _
  // Predicated region
  $region30: #{_lambda_.1} parent=0 // pred_check
    _
  $region31: #{_lambda_.1} parent=0 // pred_check_branch
    %28 = sbr.rel (0) target = $region33
  $region32: #{_lambda_.1} parent=0 // pred_region
    _
  $region33: #{_lambda_.1} parent=0 // pred_fallthru
    _
  %v29 = vld [vmem:[%s6] sm:$0xff]
  %v30 = vld [vmem:[%s6 + $0x8] sm:$0xff]
  %v31 = vld [vmem:[%s6 + $0x10] sm:$0xff]
  %v32 = vld [vmem:[%s6 + $0x18] sm:$0xff]
  %v33 = vld [vmem:[%s6 + $0x20] sm:$0x1]
  %v34 = vld [vmem:[%s6 + $0x28] sm:$0x1]
  %v35 = vld [vmem:[%s6 + $0x30] sm:$0x1]
  %v36 = vld [vmem:[%s6 + $0x38] sm:$0x1]
  %v37 = vld [vmem:[%s7] sm:$0xff]
  %38 = vst [vmem:[#allocation2] sm:$0xff] 0.0
  %39 = vst [vmem:[#allocation2 + $0x30] sm:$0xff] 0.0
  %40 = vst [vmem:[#allocation2 + $0x60] sm:$0xff] 0.0
  %41 = vst [vmem:[#allocation2 + $0x90] sm:$0xff] 0.0
  %42 = vst [vmem:[#allocation2 + $0xc0] sm:$0xff] 0.0
  %43 = vst [vmem:[#allocation2 + $0xf0] sm:$0xff] 0.0
  %44 = vst [vmem:[#allocation2 + $0x120] sm:$0xff] 0.0
  %45 = vst [vmem:[#allocation2 + $0x150] sm:$0xff] 0.0
  %46 = vst [vmem:[#allocation2 + $0x180] sm:$0xff] 0.0
  %47 = vst [vmem:[#allocation2 + $0x28] sm:$0xff] 0.0
  %48 = vst [vmem:[#allocation2 + $0x58] sm:$0xff] 0.0
  %49 = vst [vmem:[#allocation2 + $0x88] sm:$0xff] 0.0
  %50 = vst [vmem:[#allocation2 + $0xb8] sm:$0xff] 0.0
  %51 = vst [vmem:[#allocation2 + $0xe8] sm:$0xff] 0.0
  %52 = vst [vmem:[#allocation2 + $0x118] sm:$0xff] 0.0
  %53 = vst [vmem:[#allocation2 + $0x148] sm:$0xff] 0.0
  %54 = vst [vmem:[#allocation2 + $0x178] sm:$0xff] 0.0
  %55 = vst [vmem:[#allocation2 + $0x1a8] sm:$0xff] 0.0
  %v56 = vld [vmem:[%s2] sm:$0xff]
  %v57 = vld [vmem:[%s2 + $0x8] sm:$0xff]
  %v58 = vld [vmem:[%s2 + $0x10] sm:$0xff]
  %v59 = vld [vmem:[%s2 + $0x18] sm:$0xff]
  %v60 = vld [vmem:[%s0] sm:$0xff]
  %vm61 = vcmask 64512
  %v63 = vsel %vm61, %v56, 0
  %v66 = vsel %vm61, %v57, 0
  %v69 = vsel %vm61, %v58, 0
  %v72 = vsel %vm61, %v59, 0
  %74 = vmatprep.subr.mxu0 0.0
  %75 = vmatpush1.msra.mxu0 %v60
  %76 = vmatprep.subr.mxu0 0.0
  %77 = vmatpush1.msra.mxu0 0.0
  %78 = vmatprep.subr.mxu0 0.0
  %79 = vmatpush1.msra.mxu0 0.0
  %80 = vmatprep.subr.mxu0 0.0
  %81 = vmatpush1.msra.mxu0 0.0
  %82 = vmatprep.subr.mxu0 0.0
  %83 = vmatpush1.msra.mxu0 0.0
  %84 = vmatprep.subr.mxu0 0.0
  %85 = vmatpush1.msra.mxu0 0.0
  %86 = vmatprep.subr.mxu0 0.0
  %87 = vmatpush1.msra.mxu0 0.0
  %88 = vmatprep.subr.mxu0 0.0
  %89 = vmatpush1.msra.mxu0 0.0
  %90 = vmatprep.subr.mxu0 0.0
  %91 = vmatpush1.msra.mxu0 0.0
  %92 = vmatprep.subr.mxu0 0.0
  %93 = vmatpush1.msra.mxu0 0.0
  %94 = vmatprep.subr.mxu0 0.0
  %95 = vmatpush1.msra.mxu0 0.0
  %96 = vmatprep.subr.mxu0 0.0
  %97 = vmatpush1.msra.mxu0 0.0
  %98 = vmatprep.subr.mxu0 0.0
  %99 = vmatpush1.msra.mxu0 0.0
  %100 = vmatprep.subr.mxu0 0.0
  %101 = vmatpush1.msra.mxu0 0.0
  %102 = vmatprep.subr.mxu0 0.0
  %103 = vmatpush1.msra.mxu0 0.0
  %104 = vmatprep.subr.mxu0 0.0
  %105 = vmatpush1.msra.mxu0 0.0
  %106 = vmatprep.subr.mxu0 0.0
  %107 = vmatpush1.msra.mxu0 0.0
  %108 = vmatprep.subr.mxu0 0.0
  %109 = vmatpush1.msra.mxu0 0.0
  %110 = vmatprep.subr.mxu0 0.0
  %111 = vmatpush1.msra.mxu0 0.0
  %112 = vmatprep.subr.mxu0 0.0
  %113 = vmatpush1.msra.mxu0 0.0
  %114 = vmatprep.subr.mxu0 0.0
  %115 = vmatpush1.msra.mxu0 0.0
  %116 = vmatprep.subr.mxu0 0.0
  %117 = vmatpush1.msra.mxu0 0.0
  %118 = vmatprep.subr.mxu0 0.0
  %119 = vmatpush1.msra.mxu0 0.0
  %120 = vmatprep.subr.mxu0 0.0
  %121 = vmatpush1.msra.mxu0 0.0
  %122 = vmatprep.subr.mxu0 0.0
  %123 = vmatpush1.msra.mxu0 0.0
  %124 = vmatprep.subr.mxu0 0.0
  %125 = vmatpush1.msra.mxu0 0.0
  %126 = vmatprep.subr.mxu0 0.0
  %127 = vmatpush1.msra.mxu0 0.0
  %128 = vmatprep.subr.mxu0 0.0
  %129 = vmatpush1.msra.mxu0 0.0
  %130 = vmatprep.subr.mxu0 0.0
  %131 = vmatpush1.msra.mxu0 0.0
  %132 = vmatprep.subr.mxu0 0.0
  %133 = vmatpush1.msra.mxu0 0.0
  %134 = vmatprep.subr.mxu0 0.0
  %135 = vmatpush1.msra.mxu0 0.0
  %136 = vmatprep.subr.mxu0 0.0
  %137 = vmatpush1.msra.mxu0 0.0
  %138 = vmatprep.mubr.f32.mxu0 0.0
  %139 = vmatmul.mubr.f32.gmra.mrb[0].mxu0 %v63
  %v140 = vpop.f32.mrb[0].mxu0
  %v141 = vadd.f32 0.0, %v140
  %v142 = vpop.f32.mrb[0].mxu0
  %143 = vmatprep.mubr.f32.mxu0 0.0
  %144 = vmatmul.mubr.f32.gmra.mrb[0].mxu0 %v66
  %v145 = vpop.f32.mrb[0].mxu0
  %v146 = vadd.f32 0.0, %v145
  %v147 = vpop.f32.mrb[0].mxu0
  %148 = vmatprep.mubr.f32.mxu0 0.0
  %149 = vmatmul.mubr.f32.gmra.mrb[0].mxu0 %v69
  %v150 = vpop.f32.mrb[0].mxu0
  %v151 = vadd.f32 0.0, %v150
  %v152 = vpop.f32.mrb[0].mxu0
  %153 = vmatprep.mubr.f32.mxu0 0.0
  %154 = vmatmul.mubr.f32.gmra.mrb[0].mxu0 %v72
  %v155 = vpop.f32.mrb[0].mxu0
  %v156 = vadd.f32 0.0, %v155
  %v157 = vpop.f32.mrb[0].mxu0
  %158 = vdwg.mxu0
  %v159 = vpack.c.bf16 %v141, %v141
  %v160 = vpack.c.bf16 %v146, %v146
  %v161 = vpack.c.bf16 %v151, %v151
  %v162 = vpack.c.bf16 %v156, %v156
  %v163 = vld [vmem:[%s3] sm:$0xff]
  %v164 = vld [vmem:[%s3 + $0x8] sm:$0xff]
  %v165 = vld [vmem:[%s3 + $0x10] sm:$0xff]
  %v166 = vld [vmem:[%s3 + $0x18] sm:$0xff]
  %v167 = vld [vmem:[%s3 + $0x20] sm:$0xff]
  %v168 = vld [vmem:[%s3 + $0x28] sm:$0xff]
  %v169 = vld [vmem:[%s3 + $0x30] sm:$0xff]
  %v170 = vld [vmem:[%s3 + $0x38] sm:$0xff]
  %v171 = vld [vmem:[%s3 + $0x40] sm:$0xff]
  %v172 = vld [vmem:[%s3 + $0x48] sm:$0xff]
  %v173 = vld [vmem:[%s3 + $0x50] sm:$0xff]
  %v174 = vld [vmem:[%s3 + $0x58] sm:$0xff]
  %v175 = vld [vmem:[%s3 + $0x60] sm:$0xff]
  %v176 = vld [vmem:[%s3 + $0x68] sm:$0xff]
  %v177 = vld [vmem:[%s3 + $0x70] sm:$0xff]
  %v178 = vld [vmem:[%s3 + $0x78] sm:$0xff]
  %v179 = vld [vmem:[%s3 + $0x80] sm:$0xff]
  %v180 = vld [vmem:[%s3 + $0x88] sm:$0xff]
  %v181 = vld [vmem:[%s3 + $0x90] sm:$0xff]
  %v182 = vld [vmem:[%s3 + $0x98] sm:$0xff]
  %v183 = vld [vmem:[%s3 + $0xa0] sm:$0xff]
  %v184 = vld [vmem:[%s3 + $0xa8] sm:$0xff]
  %v185 = vld [vmem:[%s3 + $0xb0] sm:$0xff]
  %v186 = vld [vmem:[%s3 + $0xb8] sm:$0xff]
  %v187 = vld [vmem:[%s3 + $0xc0] sm:$0xff]
  %v188 = vld [vmem:[%s3 + $0xc8] sm:$0xff]
  %v189 = vld [vmem:[%s3 + $0xd0] sm:$0xff]
  %v190 = vld [vmem:[%s3 + $0xd8] sm:$0xff]
  %v191 = vld [vmem:[%s3 + $0xe0] sm:$0xff]
  %v192 = vld [vmem:[%s3 + $0xe8] sm:$0xff]
  %v193 = vld [vmem:[%s3 + $0xf0] sm:$0xff]
  %v194 = vld [vmem:[%s3 + $0xf8] sm:$0xff]
  %v195 = vld [vmem:[%s3 + $0x100] sm:$0xff]
  %v196 = vld [vmem:[%s3 + $0x108] sm:$0xff]
  %v197 = vld [vmem:[%s3 + $0x110] sm:$0xff]
  %v198 = vld [vmem:[%s3 + $0x118] sm:$0xff]
  %v199 = vld [vmem:[%s3 + $0x120] sm:$0xff]
  %v200 = vld [vmem:[%s3 + $0x128] sm:$0xff]
  %v201 = vld [vmem:[%s3 + $0x130] sm:$0xff]
  %v202 = vld [vmem:[%s3 + $0x138] sm:$0xff]
  %v203 = vld [vmem:[%s3 + $0x140] sm:$0xff]
  %v204 = vld [vmem:[%s3 + $0x148] sm:$0xff]
  %v205 = vld [vmem:[%s3 + $0x150] sm:$0xff]
  %v206 = vld [vmem:[%s3 + $0x158] sm:$0xff]
  %v207 = vld [vmem:[%s3 + $0x160] sm:$0xff]
  %v208 = vld [vmem:[%s3 + $0x168] sm:$0xff]
  %v209 = vld [vmem:[%s3 + $0x170] sm:$0xff]
  %v210 = vld [vmem:[%s3 + $0x178] sm:$0xff]
  %v211 = vld [vmem:[%s3 + $0x180] sm:$0xff]
  %v212 = vld [vmem:[%s3 + $0x188] sm:$0xff]
  %v213 = vld [vmem:[%s3 + $0x190] sm:$0xff]
  %v214 = vld [vmem:[%s3 + $0x198] sm:$0xff]
  %v215 = vld [vmem:[%s3 + $0x1a0] sm:$0xff]
  %v216 = vld [vmem:[%s3 + $0x1a8] sm:$0xff]
  %v217 = vld [vmem:[%s3 + $0x1b0] sm:$0xff]
  %v218 = vld [vmem:[%s3 + $0x1b8] sm:$0xff]
  %v219 = vld [vmem:[%s3 + $0x1c0] sm:$0xff]
  %v220 = vld [vmem:[%s3 + $0x1c8] sm:$0xff]
  %v221 = vld [vmem:[%s3 + $0x1d0] sm:$0xff]
  %v222 = vld [vmem:[%s3 + $0x1d8] sm:$0xff]
  %v223 = vld [vmem:[%s3 + $0x1e0] sm:$0xff]
  %v224 = vld [vmem:[%s3 + $0x1e8] sm:$0xff]
  %v225 = vld [vmem:[%s3 + $0x1f0] sm:$0xff]
  %v226 = vld [vmem:[%s3 + $0x1f8] sm:$0xff]
  %v227 = vld [vmem:[%s3 + $0x200] sm:$0xff]
  %v228 = vld [vmem:[%s3 + $0x208] sm:$0xff]
  %v229 = vld [vmem:[%s3 + $0x210] sm:$0xff]
  %v230 = vld [vmem:[%s3 + $0x218] sm:$0xff]
  %v231 = vld [vmem:[%s3 + $0x220] sm:$0xff]
  %v232 = vld [vmem:[%s3 + $0x228] sm:$0xff]
  %v233 = vld [vmem:[%s3 + $0x230] sm:$0xff]
  %v234 = vld [vmem:[%s3 + $0x238] sm:$0xff]
  %v235 = vld [vmem:[%s3 + $0x240] sm:$0xff]
  %v236 = vld [vmem:[%s3 + $0x248] sm:$0xff]
  %v237 = vld [vmem:[%s3 + $0x250] sm:$0xff]
  %v238 = vld [vmem:[%s3 + $0x258] sm:$0xff]
  %v239 = vld [vmem:[%s3 + $0x260] sm:$0xff]
  %v240 = vld [vmem:[%s3 + $0x268] sm:$0xff]
  %v241 = vld [vmem:[%s3 + $0x270] sm:$0xff]
  %v242 = vld [vmem:[%s3 + $0x278] sm:$0xff]
  %v243 = vld [vmem:[%s3 + $0x280] sm:$0xff]
  %v244 = vld [vmem:[%s3 + $0x288] sm:$0xff]
  %v245 = vld [vmem:[%s3 + $0x290] sm:$0xff]
  %v246 = vld [vmem:[%s3 + $0x298] sm:$0xff]
  %v247 = vld [vmem:[%s3 + $0x2a0] sm:$0xff]
  %v248 = vld [vmem:[%s3 + $0x2a8] sm:$0xff]
  %v249 = vld [vmem:[%s3 + $0x2b0] sm:$0xff]
  %v250 = vld [vmem:[%s3 + $0x2b8] sm:$0xff]
  %v251 = vld [vmem:[%s3 + $0x2c0] sm:$0xff]
  %v252 = vld [vmem:[%s3 + $0x2c8] sm:$0xff]
  %v253 = vld [vmem:[%s3 + $0x2d0] sm:$0xff]
  %v254 = vld [vmem:[%s3 + $0x2d8] sm:$0xff]
  %v255 = vld [vmem:[%s3 + $0x2e0] sm:$0xff]
  %v256 = vld [vmem:[%s3 + $0x2e8] sm:$0xff]
  %v257 = vld [vmem:[%s3 + $0x2f0] sm:$0xff]
  %v258 = vld [vmem:[%s3 + $0x2f8] sm:$0xff]
  %v259 = vld [vmem:[%s3 + $0x300] sm:$0xff]
  %v260 = vld [vmem:[%s3 + $0x308] sm:$0xff]
  %v261 = vld [vmem:[%s3 + $0x310] sm:$0xff]
  %v262 = vld [vmem:[%s3 + $0x318] sm:$0xff]
  %v263 = vld [vmem:[%s3 + $0x320] sm:$0xff]
  %v264 = vld [vmem:[%s3 + $0x328] sm:$0xff]
  %v265 = vld [vmem:[%s3 + $0x330] sm:$0xff]
  %v266 = vld [vmem:[%s3 + $0x338] sm:$0xff]
  %v267 = vld [vmem:[%s3 + $0x340] sm:$0xff]
  %v268 = vld [vmem:[%s3 + $0x348] sm:$0xff]
  %v269 = vld [vmem:[%s3 + $0x350] sm:$0xff]
  %v270 = vld [vmem:[%s3 + $0x358] sm:$0xff]
  %v271 = vld [vmem:[%s3 + $0x360] sm:$0xff]
  %v272 = vld [vmem:[%s3 + $0x368] sm:$0xff]
  %v273 = vld [vmem:[%s3 + $0x370] sm:$0xff]
  %v274 = vld [vmem:[%s3 + $0x378] sm:$0xff]
  %v275 = vld [vmem:[%s3 + $0x380] sm:$0xff]
  %v276 = vld [vmem:[%s3 + $0x388] sm:$0xff]
  %v277 = vld [vmem:[%s3 + $0x390] sm:$0xff]
  %v278 = vld [vmem:[%s3 + $0x398] sm:$0xff]
  %v279 = vld [vmem:[%s3 + $0x3a0] sm:$0xff]
  %v280 = vld [vmem:[%s3 + $0x3a8] sm:$0xff]
  %v281 = vld [vmem:[%s3 + $0x3b0] sm:$0xff]
  %v282 = vld [vmem:[%s3 + $0x3b8] sm:$0xff]
  %v283 = vld [vmem:[%s3 + $0x3c0] sm:$0xff]
  %v284 = vld [vmem:[%s3 + $0x3c8] sm:$0xff]
  %v285 = vld [vmem:[%s3 + $0x3d0] sm:$0xff]
  %v286 = vld [vmem:[%s3 + $0x3d8] sm:$0xff]
  %v287 = vld [vmem:[%s3 + $0x3e0] sm:$0xff]
  %v288 = vld [vmem:[%s3 + $0x3e8] sm:$0xff]
  %v289 = vld [vmem:[%s3 + $0x3f0] sm:$0xff]
  %v290 = vld [vmem:[%s3 + $0x3f8] sm:$0xff]
  %292 = vset.pattern.permute.xlu0 0
  %293 = vperm.xlu0 %292, %v37
  %v294 = vpop.permute.xlu0 %293
  %v424 = vunpack.c.l.b16 %v163
  %v425 = vunpack.c.h.b16 %v163
  %v426 = vunpack.c.l.b16 %v164
  %v427 = vunpack.c.h.b16 %v164
  %v428 = vunpack.c.l.b16 %v165
  %v429 = vunpack.c.h.b16 %v165
  %v430 = vunpack.c.l.b16 %v166
  %v431 = vunpack.c.h.b16 %v166
  %v432 = vunpack.c.l.b16 %v167
  %v433 = vunpack.c.h.b16 %v167
  %v434 = vunpack.c.l.b16 %v168
  %v435 = vunpack.c.h.b16 %v168
  %v436 = vunpack.c.l.b16 %v169
  %v437 = vunpack.c.h.b16 %v169
  %v438 = vunpack.c.l.b16 %v170
  %v439 = vunpack.c.h.b16 %v170
  %v440 = vunpack.c.l.b16 %v171
  %v441 = vunpack.c.h.b16 %v171
  %v442 = vunpack.c.l.b16 %v172
  %v443 = vunpack.c.h.b16 %v172
  %v444 = vunpack.c.l.b16 %v173
  %v445 = vunpack.c.h.b16 %v173
  %v446 = vunpack.c.l.b16 %v174
  %v447 = vunpack.c.h.b16 %v174
  %v448 = vunpack.c.l.b16 %v175
  %v449 = vunpack.c.h.b16 %v175
  %v450 = vunpack.c.l.b16 %v176
  %v451 = vunpack.c.h.b16 %v176
  %v452 = vunpack.c.l.b16 %v177
  %v453 = vunpack.c.h.b16 %v177
  %v454 = vunpack.c.l.b16 %v178
  %v455 = vunpack.c.h.b16 %v178
  %v456 = vunpack.c.l.b16 %v179
  %v457 = vunpack.c.h.b16 %v179
  %v458 = vunpack.c.l.b16 %v180
  %v459 = vunpack.c.h.b16 %v180
  %v460 = vunpack.c.l.b16 %v181
  %v461 = vunpack.c.h.b16 %v181
  %v462 = vunpack.c.l.b16 %v182
  %v463 = vunpack.c.h.b16 %v182
  %v464 = vunpack.c.l.b16 %v183
  %v465 = vunpack.c.h.b16 %v183
  %v466 = vunpack.c.l.b16 %v184
  %v467 = vunpack.c.h.b16 %v184
  %v468 = vunpack.c.l.b16 %v185
  %v469 = vunpack.c.h.b16 %v185
  %v470 = vunpack.c.l.b16 %v186
  %v471 = vunpack.c.h.b16 %v186
  %v472 = vunpack.c.l.b16 %v187
  %v473 = vunpack.c.h.b16 %v187
  %v474 = vunpack.c.l.b16 %v188
  %v475 = vunpack.c.h.b16 %v188
  %v476 = vunpack.c.l.b16 %v189
  %v477 = vunpack.c.h.b16 %v189
  %v478 = vunpack.c.l.b16 %v190
  %v479 = vunpack.c.h.b16 %v190
  %v480 = vunpack.c.l.b16 %v191
  %v481 = vunpack.c.h.b16 %v191
  %v482 = vunpack.c.l.b16 %v192
  %v483 = vunpack.c.h.b16 %v192
  %v484 = vunpack.c.l.b16 %v193
  %v485 = vunpack.c.h.b16 %v193
  %v486 = vunpack.c.l.b16 %v194
  %v487 = vunpack.c.h.b16 %v194
  %v488 = vunpack.c.l.b16 %v195
  %v489 = vunpack.c.h.b16 %v195
  %v490 = vunpack.c.l.b16 %v196
  %v491 = vunpack.c.h.b16 %v196
  %v492 = vunpack.c.l.b16 %v197
  %v493 = vunpack.c.h.b16 %v197
  %v494 = vunpack.c.l.b16 %v198
  %v495 = vunpack.c.h.b16 %v198
  %v496 = vunpack.c.l.b16 %v199
  %v497 = vunpack.c.h.b16 %v199
  %v498 = vunpack.c.l.b16 %v200
  %v499 = vunpack.c.h.b16 %v200
  %v500 = vunpack.c.l.b16 %v201
  %v501 = vunpack.c.h.b16 %v201
  %v502 = vunpack.c.l.b16 %v202
  %v503 = vunpack.c.h.b16 %v202
  %v504 = vunpack.c.l.b16 %v203
  %v505 = vunpack.c.h.b16 %v203
  %v506 = vunpack.c.l.b16 %v204
  %v507 = vunpack.c.h.b16 %v204
  %v508 = vunpack.c.l.b16 %v205
  %v509 = vunpack.c.h.b16 %v205
  %v510 = vunpack.c.l.b16 %v206
  %v511 = vunpack.c.h.b16 %v206
  %v512 = vunpack.c.l.b16 %v207
  %v513 = vunpack.c.h.b16 %v207
  %v514 = vunpack.c.l.b16 %v208
  %v515 = vunpack.c.h.b16 %v208
  %v516 = vunpack.c.l.b16 %v209
  %v517 = vunpack.c.h.b16 %v209
  %v518 = vunpack.c.l.b16 %v210
  %v519 = vunpack.c.h.b16 %v210
  %v520 = vunpack.c.l.b16 %v211
  %v521 = vunpack.c.h.b16 %v211
  %v522 = vunpack.c.l.b16 %v212
  %v523 = vunpack.c.h.b16 %v212
  %v524 = vunpack.c.l.b16 %v213
  %v525 = vunpack.c.h.b16 %v213
  %v526 = vunpack.c.l.b16 %v214
  %v527 = vunpack.c.h.b16 %v214
  %v528 = vunpack.c.l.b16 %v215
  %v529 = vunpack.c.h.b16 %v215
  %v530 = vunpack.c.l.b16 %v216
  %v531 = vunpack.c.h.b16 %v216
  %v532 = vunpack.c.l.b16 %v217
  %v533 = vunpack.c.h.b16 %v217
  %v534 = vunpack.c.l.b16 %v218
  %v535 = vunpack.c.h.b16 %v218
  %v536 = vunpack.c.l.b16 %v219
  %v537 = vunpack.c.h.b16 %v219
  %v538 = vunpack.c.l.b16 %v220
  %v539 = vunpack.c.h.b16 %v220
  %v540 = vunpack.c.l.b16 %v221
  %v541 = vunpack.c.h.b16 %v221
  %v542 = vunpack.c.l.b16 %v222
  %v543 = vunpack.c.h.b16 %v222
  %v544 = vunpack.c.l.b16 %v223
  %v545 = vunpack.c.h.b16 %v223
  %v546 = vunpack.c.l.b16 %v224
  %v547 = vunpack.c.h.b16 %v224
  %v548 = vunpack.c.l.b16 %v225
  %v549 = vunpack.c.h.b16 %v225
  %v550 = vunpack.c.l.b16 %v226
  %v551 = vunpack.c.h.b16 %v226
  %v552 = vunpack.c.l.b16 %v227
  %v553 = vunpack.c.h.b16 %v227
  %v554 = vunpack.c.l.b16 %v228
  %v555 = vunpack.c.h.b16 %v228
  %v556 = vunpack.c.l.b16 %v229
  %v557 = vunpack.c.h.b16 %v229
  %v558 = vunpack.c.l.b16 %v230
  %v559 = vunpack.c.h.b16 %v230
  %v560 = vunpack.c.l.b16 %v231
  %v561 = vunpack.c.h.b16 %v231
  %v562 = vunpack.c.l.b16 %v232
  %v563 = vunpack.c.h.b16 %v232
  %v564 = vunpack.c.l.b16 %v233
  %v565 = vunpack.c.h.b16 %v233
  %v566 = vunpack.c.l.b16 %v234
  %v567 = vunpack.c.h.b16 %v234
  %v568 = vunpack.c.l.b16 %v235
  %v569 = vunpack.c.h.b16 %v235
  %v570 = vunpack.c.l.b16 %v236
  %v571 = vunpack.c.h.b16 %v236
  %v572 = vunpack.c.l.b16 %v237
  %v573 = vunpack.c.h.b16 %v237
  %v574 = vunpack.c.l.b16 %v238
  %v575 = vunpack.c.h.b16 %v238
  %v576 = vunpack.c.l.b16 %v239
  %v577 = vunpack.c.h.b16 %v239
  %v578 = vunpack.c.l.b16 %v240
  %v579 = vunpack.c.h.b16 %v240
  %v580 = vunpack.c.l.b16 %v241
  %v581 = vunpack.c.h.b16 %v241
  %v582 = vunpack.c.l.b16 %v242
  %v583 = vunpack.c.h.b16 %v242
  %v584 = vunpack.c.l.b16 %v243
  %v585 = vunpack.c.h.b16 %v243
  %v586 = vunpack.c.l.b16 %v244
  %v587 = vunpack.c.h.b16 %v244
  %v588 = vunpack.c.l.b16 %v245
  %v589 = vunpack.c.h.b16 %v245
  %v590 = vunpack.c.l.b16 %v246
  %v591 = vunpack.c.h.b16 %v246
  %v592 = vunpack.c.l.b16 %v247
  %v593 = vunpack.c.h.b16 %v247
  %v594 = vunpack.c.l.b16 %v248
  %v595 = vunpack.c.h.b16 %v248
  %v596 = vunpack.c.l.b16 %v249
  %v597 = vunpack.c.h.b16 %v249
  %v598 = vunpack.c.l.b16 %v250
  %v599 = vunpack.c.h.b16 %v250
  %v600 = vunpack.c.l.b16 %v251
  %v601 = vunpack.c.h.b16 %v251
  %v602 = vunpack.c.l.b16 %v252
  %v603 = vunpack.c.h.b16 %v252
  %v604 = vunpack.c.l.b16 %v253
  %v605 = vunpack.c.h.b16 %v253
  %v606 = vunpack.c.l.b16 %v254
  %v607 = vunpack.c.h.b16 %v254
  %v608 = vunpack.c.l.b16 %v255
  %v609 = vunpack.c.h.b16 %v255
  %v610 = vunpack.c.l.b16 %v256
  %v611 = vunpack.c.h.b16 %v256
  %v612 = vunpack.c.l.b16 %v257
  %v613 = vunpack.c.h.b16 %v257
  %v614 = vunpack.c.l.b16 %v258
  %v615 = vunpack.c.h.b16 %v258
  %v616 = vunpack.c.l.b16 %v259
  %v617 = vunpack.c.h.b16 %v259
  %v618 = vunpack.c.l.b16 %v260
  %v619 = vunpack.c.h.b16 %v260
  %v620 = vunpack.c.l.b16 %v261
  %v621 = vunpack.c.h.b16 %v261
  %v622 = vunpack.c.l.b16 %v262
  %v623 = vunpack.c.h.b16 %v262
  %v624 = vunpack.c.l.b16 %v263
  %v625 = vunpack.c.h.b16 %v263
  %v626 = vunpack.c.l.b16 %v264
  %v627 = vunpack.c.h.b16 %v264
  %v628 = vunpack.c.l.b16 %v265
  %v629 = vunpack.c.h.b16 %v265
  %v630 = vunpack.c.l.b16 %v266
  %v631 = vunpack.c.h.b16 %v266
  %v632 = vunpack.c.l.b16 %v267
  %v633 = vunpack.c.h.b16 %v267
  %v634 = vunpack.c.l.b16 %v268
  %v635 = vunpack.c.h.b16 %v268
  %v636 = vunpack.c.l.b16 %v269
  %v637 = vunpack.c.h.b16 %v269
  %v638 = vunpack.c.l.b16 %v270
  %v639 = vunpack.c.h.b16 %v270
  %v640 = vunpack.c.l.b16 %v271
  %v641 = vunpack.c.h.b16 %v271
  %v642 = vunpack.c.l.b16 %v272
  %v643 = vunpack.c.h.b16 %v272
  %v644 = vunpack.c.l.b16 %v273
  %v645 = vunpack.c.h.b16 %v273
  %v646 = vunpack.c.l.b16 %v274
  %v647 = vunpack.c.h.b16 %v274
  %v648 = vunpack.c.l.b16 %v275
  %v649 = vunpack.c.h.b16 %v275
  %v650 = vunpack.c.l.b16 %v276
  %v651 = vunpack.c.h.b16 %v276
  %v652 = vunpack.c.l.b16 %v277
  %v653 = vunpack.c.h.b16 %v277
  %v654 = vunpack.c.l.b16 %v278
  %v655 = vunpack.c.h.b16 %v278
  %v656 = vunpack.c.l.b16 %v279
  %v657 = vunpack.c.h.b16 %v279
  %v658 = vunpack.c.l.b16 %v280
  %v659 = vunpack.c.h.b16 %v280
  %v660 = vunpack.c.l.b16 %v281
  %v661 = vunpack.c.h.b16 %v281
  %v662 = vunpack.c.l.b16 %v282
  %v663 = vunpack.c.h.b16 %v282
  %v664 = vunpack.c.l.b16 %v283
  %v665 = vunpack.c.h.b16 %v283
  %v666 = vunpack.c.l.b16 %v284
  %v667 = vunpack.c.h.b16 %v284
  %v668 = vunpack.c.l.b16 %v285
  %v669 = vunpack.c.h.b16 %v285
  %v670 = vunpack.c.l.b16 %v286
  %v671 = vunpack.c.h.b16 %v286
  %v672 = vunpack.c.l.b16 %v287
  %v673 = vunpack.c.h.b16 %v287
  %v674 = vunpack.c.l.b16 %v288
  %v675 = vunpack.c.h.b16 %v288
  %v676 = vunpack.c.l.b16 %v289
  %v677 = vunpack.c.h.b16 %v289
  %v678 = vunpack.c.l.b16 %v290
  %v679 = vunpack.c.h.b16 %v290
  %v680 = vpack.c.b16 %v428, %v424
  %v681 = vpack.c.b16 %v429, %v425
  %v682 = vpack.c.b16 %v430, %v426
  %v683 = vpack.c.b16 %v431, %v427
  %v684 = vpack.c.b16 %v436, %v432
  %v685 = vpack.c.b16 %v437, %v433
  %v686 = vpack.c.b16 %v438, %v434
  %v687 = vpack.c.b16 %v439, %v435
  %v688 = vpack.c.b16 %v444, %v440
  %v689 = vpack.c.b16 %v445, %v441
  %v690 = vpack.c.b16 %v446, %v442
  %v691 = vpack.c.b16 %v447, %v443
  %v692 = vpack.c.b16 %v452, %v448
  %v693 = vpack.c.b16 %v453, %v449
  %v694 = vpack.c.b16 %v454, %v450
  %v695 = vpack.c.b16 %v455, %v451
  %v696 = vpack.c.b16 %v460, %v456
  %v697 = vpack.c.b16 %v461, %v457
  %v698 = vpack.c.b16 %v462, %v458
  %v699 = vpack.c.b16 %v463, %v459
  %v700 = vpack.c.b16 %v468, %v464
  %v701 = vpack.c.b16 %v469, %v465
  %v702 = vpack.c.b16 %v470, %v466
  %v703 = vpack.c.b16 %v471, %v467
  %v704 = vpack.c.b16 %v476, %v472
  %v705 = vpack.c.b16 %v477, %v473
  %v706 = vpack.c.b16 %v478, %v474
  %v707 = vpack.c.b16 %v479, %v475
  %v708 = vpack.c.b16 %v484, %v480
  %v709 = vpack.c.b16 %v485, %v481
  %v710 = vpack.c.b16 %v486, %v482
  %v711 = vpack.c.b16 %v487, %v483
  %v712 = vpack.c.b16 %v492, %v488
  %v713 = vpack.c.b16 %v493, %v489
  %v714 = vpack.c.b16 %v494, %v490
  %v715 = vpack.c.b16 %v495, %v491
  %v716 = vpack.c.b16 %v500, %v496
  %v717 = vpack.c.b16 %v501, %v497
  %v718 = vpack.c.b16 %v502, %v498
  %v719 = vpack.c.b16 %v503, %v499
  %v720 = vpack.c.b16 %v508, %v504
  %v721 = vpack.c.b16 %v509, %v505
  %v722 = vpack.c.b16 %v510, %v506
  %v723 = vpack.c.b16 %v511, %v507
  %v724 = vpack.c.b16 %v516, %v512
  %v725 = vpack.c.b16 %v517, %v513
  %v726 = vpack.c.b16 %v518, %v514
  %v727 = vpack.c.b16 %v519, %v515
  %v728 = vpack.c.b16 %v524, %v520
  %v729 = vpack.c.b16 %v525, %v521
  %v730 = vpack.c.b16 %v526, %v522
  %v731 = vpack.c.b16 %v527, %v523
  %v732 = vpack.c.b16 %v532, %v528
  %v733 = vpack.c.b16 %v533, %v529
  %v734 = vpack.c.b16 %v534, %v530
  %v735 = vpack.c.b16 %v535, %v531
  %v736 = vpack.c.b16 %v540, %v536
  %v737 = vpack.c.b16 %v541, %v537
  %v738 = vpack.c.b16 %v542, %v538
  %v739 = vpack.c.b16 %v543, %v539
  %v740 = vpack.c.b16 %v548, %v544
  %v741 = vpack.c.b16 %v549, %v545
  %v742 = vpack.c.b16 %v550, %v546
  %v743 = vpack.c.b16 %v551, %v547
  %v744 = vpack.c.b16 %v556, %v552
  %v745 = vpack.c.b16 %v557, %v553
  %v746 = vpack.c.b16 %v558, %v554
  %v747 = vpack.c.b16 %v559, %v555
  %v748 = vpack.c.b16 %v564, %v560
  %v749 = vpack.c.b16 %v565, %v561
  %v750 = vpack.c.b16 %v566, %v562
  %v751 = vpack.c.b16 %v567, %v563
  %v752 = vpack.c.b16 %v572, %v568
  %v753 = vpack.c.b16 %v573, %v569
  %v754 = vpack.c.b16 %v574, %v570
  %v755 = vpack.c.b16 %v575, %v571
  %v756 = vpack.c.b16 %v580, %v576
  %v757 = vpack.c.b16 %v581, %v577
  %v758 = vpack.c.b16 %v582, %v578
  %v759 = vpack.c.b16 %v583, %v579
  %v760 = vpack.c.b16 %v588, %v584
  %v761 = vpack.c.b16 %v589, %v585
  %v762 = vpack.c.b16 %v590, %v586
  %v763 = vpack.c.b16 %v591, %v587
  %v764 = vpack.c.b16 %v596, %v592
  %v765 = vpack.c.b16 %v597, %v593
  %v766 = vpack.c.b16 %v598, %v594
  %v767 = vpack.c.b16 %v599, %v595
  %v768 = vpack.c.b16 %v604, %v600
  %v769 = vpack.c.b16 %v605, %v601
  %v770 = vpack.c.b16 %v606, %v602
  %v771 = vpack.c.b16 %v607, %v603
  %v772 = vpack.c.b16 %v612, %v608
  %v773 = vpack.c.b16 %v613, %v609
  %v774 = vpack.c.b16 %v614, %v610
  %v775 = vpack.c.b16 %v615, %v611
  %v776 = vpack.c.b16 %v620, %v616
  %v777 = vpack.c.b16 %v621, %v617
  %v778 = vpack.c.b16 %v622, %v618
  %v779 = vpack.c.b16 %v623, %v619
  %v780 = vpack.c.b16 %v628, %v624
  %v781 = vpack.c.b16 %v629, %v625
  %v782 = vpack.c.b16 %v630, %v626
  %v783 = vpack.c.b16 %v631, %v627
  %v784 = vpack.c.b16 %v636, %v632
  %v785 = vpack.c.b16 %v637, %v633
  %v786 = vpack.c.b16 %v638, %v634
  %v787 = vpack.c.b16 %v639, %v635
  %v788 = vpack.c.b16 %v644, %v640
  %v789 = vpack.c.b16 %v645, %v641
  %v790 = vpack.c.b16 %v646, %v642
  %v791 = vpack.c.b16 %v647, %v643
  %v792 = vpack.c.b16 %v652, %v648
  %v793 = vpack.c.b16 %v653, %v649
  %v794 = vpack.c.b16 %v654, %v650
  %v795 = vpack.c.b16 %v655, %v651
  %v796 = vpack.c.b16 %v660, %v656
  %v797 = vpack.c.b16 %v661, %v657
  %v798 = vpack.c.b16 %v662, %v658
  %v799 = vpack.c.b16 %v663, %v659
  %v800 = vpack.c.b16 %v668, %v664
  %v801 = vpack.c.b16 %v669, %v665
  %v802 = vpack.c.b16 %v670, %v666
  %v803 = vpack.c.b16 %v671, %v667
  %v804 = vpack.c.b16 %v676, %v672
  %v805 = vpack.c.b16 %v677, %v673
  %v806 = vpack.c.b16 %v678, %v674
  %v807 = vpack.c.b16 %v679, %v675
  %936 = vmatprep.subr.bf16.mxu0 %v681
  %937 = vmatpush1.bf16.msra.mxu0 %v680
  %938 = vmatprep.subr.bf16.mxu0 %v685
  %939 = vmatpush1.bf16.msra.mxu0 %v684
  %940 = vmatprep.subr.bf16.mxu0 %v689
  %941 = vmatpush1.bf16.msra.mxu0 %v688
  %942 = vmatprep.subr.bf16.mxu0 %v693
  %943 = vmatpush1.bf16.msra.mxu0 %v692
  %944 = vmatprep.subr.bf16.mxu0 %v697
  %945 = vmatpush1.bf16.msra.mxu0 %v696
  %946 = vmatprep.subr.bf16.mxu0 %v701
  %947 = vmatpush1.bf16.msra.mxu0 %v700
  %948 = vmatprep.subr.bf16.mxu0 %v705
  %949 = vmatpush1.bf16.msra.mxu0 %v704
  %950 = vmatprep.subr.bf16.mxu0 %v709
  %951 = vmatpush1.bf16.msra.mxu0 %v708
  %952 = vmatprep.subr.bf16.mxu0 %v713
  %953 = vmatpush1.bf16.msra.mxu0 %v712
  %954 = vmatprep.subr.bf16.mxu0 %v717
  %955 = vmatpush1.bf16.msra.mxu0 %v716
  %956 = vmatprep.subr.bf16.mxu0 %v721
  %957 = vmatpush1.bf16.msra.mxu0 %v720
  %958 = vmatprep.subr.bf16.mxu0 %v725
  %959 = vmatpush1.bf16.msra.mxu0 %v724
  %960 = vmatprep.subr.bf16.mxu0 %v729
  %961 = vmatpush1.bf16.msra.mxu0 %v728
  %962 = vmatprep.subr.bf16.mxu0 %v733
  %963 = vmatpush1.bf16.msra.mxu0 %v732
  %964 = vmatprep.subr.bf16.mxu0 %v737
  %965 = vmatpush1.bf16.msra.mxu0 %v736
  %966 = vmatprep.subr.bf16.mxu0 %v741
  %967 = vmatpush1.bf16.msra.mxu0 %v740
  %968 = vmatprep.mubr.bf16.mxu0 %v160
  %969 = vmatmul.mubr.bf16.gmra.mrb[0].mxu0 %v159
  %v970 = vpop.f32.mrb[0].mxu0
  %v971 = vadd.f32 %v294, %v970
  %v972 = vpop.f32.mrb[0].mxu0
  %v973 = vadd.f32 %v294, %v972
  %v974 = vpop.f32.mrb[0].mxu0
  %v975 = vpop.f32.mrb[0].mxu0
  %976 = vdwg.mxu0
  %977 = vmatprep.subr.bf16.mxu0 %v745
  %978 = vmatpush1.bf16.msra.mxu0 %v744
  %979 = vmatprep.subr.bf16.mxu0 %v749
  %980 = vmatpush1.bf16.msra.mxu0 %v748
  %981 = vmatprep.subr.bf16.mxu0 %v753
  %982 = vmatpush1.bf16.msra.mxu0 %v752
  %983 = vmatprep.subr.bf16.mxu0 %v757
  %984 = vmatpush1.bf16.msra.mxu0 %v756
  %985 = vmatprep.subr.bf16.mxu0 %v761
  %986 = vmatpush1.bf16.msra.mxu0 %v760
  %987 = vmatprep.subr.bf16.mxu0 %v765
  %988 = vmatpush1.bf16.msra.mxu0 %v764
  %989 = vmatprep.subr.bf16.mxu0 %v769
  %990 = vmatpush1.bf16.msra.mxu0 %v768
  %991 = vmatprep.subr.bf16.mxu0 %v773
  %992 = vmatpush1.bf16.msra.mxu0 %v772
  %993 = vmatprep.subr.bf16.mxu0 %v777
  %994 = vmatpush1.bf16.msra.mxu0 %v776
  %995 = vmatprep.subr.bf16.mxu0 %v781
  %996 = vmatpush1.bf16.msra.mxu0 %v780
  %997 = vmatprep.subr.bf16.mxu0 %v785
  %998 = vmatpush1.bf16.msra.mxu0 %v784
  %999 = vmatprep.subr.bf16.mxu0 %v789
  %1000 = vmatpush1.bf16.msra.mxu0 %v788
  %1001 = vmatprep.subr.bf16.mxu0 %v793
  %1002 = vmatpush1.bf16.msra.mxu0 %v792
  %1003 = vmatprep.subr.bf16.mxu0 %v797
  %1004 = vmatpush1.bf16.msra.mxu0 %v796
  %1005 = vmatprep.subr.bf16.mxu0 %v801
  %1006 = vmatpush1.bf16.msra.mxu0 %v800
  %1007 = vmatprep.subr.bf16.mxu0 %v805
  %1008 = vmatpush1.bf16.msra.mxu0 %v804
  %1009 = vmatprep.mubr.bf16.mxu0 %v162
  %1010 = vmatmul.mubr.bf16.gmra.mrb[0].mxu0 %v161
  %v1011 = vpop.f32.mrb[0].mxu0
  %v1012 = vadd.f32 %v971, %v1011
  %v1013 = vpop.f32.mrb[0].mxu0
  %v1014 = vadd.f32 %v973, %v1013
  %v1015 = vpop.f32.mrb[0].mxu0
  %v1016 = vpop.f32.mrb[0].mxu0
  %1017 = vdwg.mxu0
  %1018 = vmatprep.subr.bf16.mxu0 %v683
  %1019 = vmatpush1.bf16.msra.mxu0 %v682
  %1020 = vmatprep.subr.bf16.mxu0 %v687
  %1021 = vmatpush1.bf16.msra.mxu0 %v686
  %1022 = vmatprep.subr.bf16.mxu0 %v691
  %1023 = vmatpush1.bf16.msra.mxu0 %v690
  %1024 = vmatprep.subr.bf16.mxu0 %v695
  %1025 = vmatpush1.bf16.msra.mxu0 %v694
  %1026 = vmatprep.subr.bf16.mxu0 %v699
  %1027 = vmatpush1.bf16.msra.mxu0 %v698
  %1028 = vmatprep.subr.bf16.mxu0 %v703
  %1029 = vmatpush1.bf16.msra.mxu0 %v702
  %1030 = vmatprep.subr.bf16.mxu0 %v707
  %1031 = vmatpush1.bf16.msra.mxu0 %v706
  %1032 = vmatprep.subr.bf16.mxu0 %v711
  %1033 = vmatpush1.bf16.msra.mxu0 %v710
  %1034 = vmatprep.subr.bf16.mxu0 %v715
  %1035 = vmatpush1.bf16.msra.mxu0 %v714
  %1036 = vmatprep.subr.bf16.mxu0 %v719
  %1037 = vmatpush1.bf16.msra.mxu0 %v718
  %1038 = vmatprep.subr.bf16.mxu0 %v723
  %1039 = vmatpush1.bf16.msra.mxu0 %v722
  %1040 = vmatprep.subr.bf16.mxu0 %v727
  %1041 = vmatpush1.bf16.msra.mxu0 %v726
  %1042 = vmatprep.subr.bf16.mxu0 %v731
  %1043 = vmatpush1.bf16.msra.mxu0 %v730
  %1044 = vmatprep.subr.bf16.mxu0 %v735
  %1045 = vmatpush1.bf16.msra.mxu0 %v734
  %1046 = vmatprep.subr.bf16.mxu0 %v739
  %1047 = vmatpush1.bf16.msra.mxu0 %v738
  %1048 = vmatprep.subr.bf16.mxu0 %v743
  %1049 = vmatpush1.bf16.msra.mxu0 %v742
  %1050 = vmatprep.mubr.bf16.mxu0 %v160
  %1051 = vmatmul.mubr.bf16.gmra.mrb[0].mxu0 %v159
  %v1052 = vpop.f32.mrb[0].mxu0
  %v1053 = vadd.f32 %v294, %v1052
  %v1054 = vpop.f32.mrb[0].mxu0
  %v1055 = vadd.f32 %v294, %v1054
  %v1056 = vpop.f32.mrb[0].mxu0
  %v1057 = vpop.f32.mrb[0].mxu0
  %1058 = vdwg.mxu0
  %1059 = vmatprep.subr.bf16.mxu0 %v747
  %1060 = vmatpush1.bf16.msra.mxu0 %v746
  %1061 = vmatprep.subr.bf16.mxu0 %v751
  %1062 = vmatpush1.bf16.msra.mxu0 %v750
  %1063 = vmatprep.subr.bf16.mxu0 %v755
  %1064 = vmatpush1.bf16.msra.mxu0 %v754
  %1065 = vmatprep.subr.bf16.mxu0 %v759
  %1066 = vmatpush1.bf16.msra.mxu0 %v758
  %1067 = vmatprep.subr.bf16.mxu0 %v763
  %1068 = vmatpush1.bf16.msra.mxu0 %v762
  %1069 = vmatprep.subr.bf16.mxu0 %v767
  %1070 = vmatpush1.bf16.msra.mxu0 %v766
  %1071 = vmatprep.subr.bf16.mxu0 %v771
  %1072 = vmatpush1.bf16.msra.mxu0 %v770
  %1073 = vmatprep.subr.bf16.mxu0 %v775
  %1074 = vmatpush1.bf16.msra.mxu0 %v774
  %1075 = vmatprep.subr.bf16.mxu0 %v779
  %1076 = vmatpush1.bf16.msra.mxu0 %v778
  %1077 = vmatprep.subr.bf16.mxu0 %v783
  %1078 = vmatpush1.bf16.msra.mxu0 %v782
  %1079 = vmatprep.subr.bf16.mxu0 %v787
  %1080 = vmatpush1.bf16.msra.mxu0 %v786
  %1081 = vmatprep.subr.bf16.mxu0 %v791
  %1082 = vmatpush1.bf16.msra.mxu0 %v790
  %1083 = vmatprep.subr.bf16.mxu0 %v795
  %1084 = vmatpush1.bf16.msra.mxu0 %v794
  %1085 = vmatprep.subr.bf16.mxu0 %v799
  %1086 = vmatpush1.bf16.msra.mxu0 %v798
  %1087 = vmatprep.subr.bf16.mxu0 %v803
  %1088 = vmatpush1.bf16.msra.mxu0 %v802
  %1089 = vmatprep.subr.bf16.mxu0 %v807
  %1090 = vmatpush1.bf16.msra.mxu0 %v806
  %1091 = vmatprep.mubr.bf16.mxu0 %v162
  %1092 = vmatmul.mubr.bf16.gmra.mrb[0].mxu0 %v161
  %v1093 = vpop.f32.mrb[0].mxu0
  %v1094 = vadd.f32 %v1053, %v1093
  %v1095 = vpop.f32.mrb[0].mxu0
  %v1096 = vadd.f32 %v1055, %v1095
  %v1097 = vpop.f32.mrb[0].mxu0
  %v1098 = vpop.f32.mrb[0].mxu0
  %1099 = vdwg.mxu0
  %v1100 = vld [vmem:[%s1] sm:$0xff]
  %v1101 = vld [vmem:[%s1 + $0x8] sm:$0xff]
  %v1104 = vcombine.high %v1100, %v1100
  %v1105 = vcombine.high %v1101, %v1101
  %v1112 = vrot.slane %v1012, 4
  %v1113 = vrot.slane %v1014, 4
  %v1114 = vrot.slane %v1094, 4
  %v1115 = vrot.slane %v1096, 4
  %vm1120 = vcmask 1043456
  %v1121 = vsel %vm1120, %v1100, %v1112
  %v1122 = vsel %vm1120, %v1104, %v1113
  %v1123 = vsel %vm1120, %v1101, %v1114
  %v1124 = vsel %vm1120, %v1105, %v1115
  %v1125 = vld [vmem:[%s4] sm:$0xff]
  %v1126 = vld [vmem:[%s4 + $0x8] sm:$0xff]
  %v1127 = vld [vmem:[%s4 + $0x10] sm:$0xff]
  %v1128 = vld [vmem:[%s4 + $0x18] sm:$0xff]
  %v1129 = vld [vmem:[%s4 + $0x20] sm:$0xff]
  %v1130 = vld [vmem:[%s4 + $0x28] sm:$0xff]
  %v1131 = vld [vmem:[%s4 + $0x30] sm:$0xff]
  %v1132 = vld [vmem:[%s4 + $0x38] sm:$0xff]
  %v1133 = vld [vmem:[%s4 + $0x40] sm:$0xff]
  %v1135 = vsel %vm61, %v1125, 0
  %v1138 = vsel %vm61, %v1126, 0
  %v1141 = vsel %vm61, %v1127, 0
  %v1144 = vsel %vm61, %v1128, 0
  %v1147 = vsel %vm61, %v1129, 0
  %v1150 = vsel %vm61, %v1130, 0
  %v1153 = vsel %vm61, %v1131, 0
  %v1156 = vsel %vm61, %v1132, 0
  %v1159 = vsel %vm61, %v1133, 0
  %1161 = vmatprep.subr.mxu0 %v1122
  %1162 = vmatpush1.msra.mxu0 %v1121
  %1163 = vmatprep.subr.mxu0 0.0
  %1164 = vmatpush1.msra.mxu0 0.0
  %1165 = vmatprep.subr.mxu0 0.0
  %1166 = vmatpush1.msra.mxu0 0.0
  %1167 = vmatprep.subr.mxu0 0.0
  %1168 = vmatpush1.msra.mxu0 0.0
  %1169 = vmatprep.subr.mxu0 0.0
  %1170 = vmatpush1.msra.mxu0 0.0
  %1171 = vmatprep.subr.mxu0 0.0
  %1172 = vmatpush1.msra.mxu0 0.0
  %1173 = vmatprep.subr.mxu0 0.0
  %1174 = vmatpush1.msra.mxu0 0.0
  %1175 = vmatprep.subr.mxu0 0.0
  %1176 = vmatpush1.msra.mxu0 0.0
  %1177 = vmatprep.subr.mxu0 0.0
  %1178 = vmatpush1.msra.mxu0 0.0
  %1179 = vmatprep.subr.mxu0 0.0
  %1180 = vmatpush1.msra.mxu0 0.0
  %1181 = vmatprep.subr.mxu0 0.0
  %1182 = vmatpush1.msra.mxu0 0.0
  %1183 = vmatprep.subr.mxu0 0.0
  %1184 = vmatpush1.msra.mxu0 0.0
  %1185 = vmatprep.subr.mxu0 0.0
  %1186 = vmatpush1.msra.mxu0 0.0
  %1187 = vmatprep.subr.mxu0 0.0
  %1188 = vmatpush1.msra.mxu0 0.0
  %1189 = vmatprep.subr.mxu0 0.0
  %1190 = vmatpush1.msra.mxu0 0.0
  %1191 = vmatprep.subr.mxu0 0.0
  %1192 = vmatpush1.msra.mxu0 0.0
  %1193 = vmatprep.subr.mxu0 0.0
  %1194 = vmatpush1.msra.mxu0 0.0
  %1195 = vmatprep.subr.mxu0 0.0
  %1196 = vmatpush1.msra.mxu0 0.0
  %1197 = vmatprep.subr.mxu0 0.0
  %1198 = vmatpush1.msra.mxu0 0.0
  %1199 = vmatprep.subr.mxu0 0.0
  %1200 = vmatpush1.msra.mxu0 0.0
  %1201 = vmatprep.subr.mxu0 0.0
  %1202 = vmatpush1.msra.mxu0 0.0
  %1203 = vmatprep.subr.mxu0 0.0
  %1204 = vmatpush1.msra.mxu0 0.0
  %1205 = vmatprep.subr.mxu0 0.0
  %1206 = vmatpush1.msra.mxu0 0.0
  %1207 = vmatprep.subr.mxu0 0.0
  %1208 = vmatpush1.msra.mxu0 0.0
  %1209 = vmatprep.subr.mxu0 0.0
  %1210 = vmatpush1.msra.mxu0 0.0
  %1211 = vmatprep.subr.mxu0 0.0
  %1212 = vmatpush1.msra.mxu0 0.0
  %1213 = vmatprep.subr.mxu0 0.0
  %1214 = vmatpush1.msra.mxu0 0.0
  %1215 = vmatprep.subr.mxu0 0.0
  %1216 = vmatpush1.msra.mxu0 0.0
  %1217 = vmatprep.subr.mxu0 0.0
  %1218 = vmatpush1.msra.mxu0 0.0
  %1219 = vmatprep.subr.mxu0 0.0
  %1220 = vmatpush1.msra.mxu0 0.0
  %1221 = vmatprep.subr.mxu0 0.0
  %1222 = vmatpush1.msra.mxu0 0.0
  %1223 = vmatprep.subr.mxu0 0.0
  %1224 = vmatpush1.msra.mxu0 0.0
  %1225 = vmatprep.mubr.f32.mxu0 0.0
  %1226 = vmatmul.mubr.f32.gmra.mrb[0].mxu0 %v1135
  %v1227 = vpop.f32.mrb[0].mxu0
  %v1228 = vadd.f32 0.0, %v1227
  %v1229 = vpop.f32.mrb[0].mxu0
  %v1230 = vadd.f32 0.0, %v1229
  %1231 = vmatprep.mubr.f32.mxu0 0.0
  %1232 = vmatmul.mubr.f32.gmra.mrb[0].mxu0 %v1138
  %v1233 = vpop.f32.mrb[0].mxu0
  %v1234 = vadd.f32 0.0, %v1233
  %v1235 = vpop.f32.mrb[0].mxu0
  %v1236 = vadd.f32 0.0, %v1235
  %1237 = vmatprep.mubr.f32.mxu0 0.0
  %1238 = vmatmul.mubr.f32.gmra.mrb[0].mxu0 %v1141
  %v1239 = vpop.f32.mrb[0].mxu0
  %v1240 = vadd.f32 0.0, %v1239
  %v1241 = vpop.f32.mrb[0].mxu0
  %v1242 = vadd.f32 0.0, %v1241
  %1243 = vmatprep.mubr.f32.mxu0 0.0
  %1244 = vmatmul.mubr.f32.gmra.mrb[0].mxu0 %v1144
  %v1245 = vpop.f32.mrb[0].mxu0
  %v1246 = vadd.f32 0.0, %v1245
  %v1247 = vpop.f32.mrb[0].mxu0
  %v1248 = vadd.f32 0.0, %v1247
  %1249 = vmatprep.mubr.f32.mxu0 0.0
  %1250 = vmatmul.mubr.f32.gmra.mrb[0].mxu0 %v1147
  %v1251 = vpop.f32.mrb[0].mxu0
  %v1252 = vadd.f32 0.0, %v1251
  %v1253 = vpop.f32.mrb[0].mxu0
  %v1254 = vadd.f32 0.0, %v1253
  %1255 = vmatprep.mubr.f32.mxu0 0.0
  %1256 = vmatmul.mubr.f32.gmra.mrb[0].mxu0 %v1150
  %v1257 = vpop.f32.mrb[0].mxu0
  %v1258 = vadd.f32 0.0, %v1257
  %v1259 = vpop.f32.mrb[0].mxu0
  %v1260 = vadd.f32 0.0, %v1259
  %1261 = vmatprep.mubr.f32.mxu0 0.0
  %1262 = vmatmul.mubr.f32.gmra.mrb[0].mxu0 %v1153
  %v1263 = vpop.f32.mrb[0].mxu0
  %v1264 = vadd.f32 0.0, %v1263
  %v1265 = vpop.f32.mrb[0].mxu0
  %v1266 = vadd.f32 0.0, %v1265
  %1267 = vmatprep.mubr.f32.mxu0 0.0
  %1268 = vmatmul.mubr.f32.gmra.mrb[0].mxu0 %v1156
  %v1269 = vpop.f32.mrb[0].mxu0
  %v1270 = vadd.f32 0.0, %v1269
  %v1271 = vpop.f32.mrb[0].mxu0
  %v1272 = vadd.f32 0.0, %v1271
  %1273 = vmatprep.mubr.f32.mxu0 0.0
  %1274 = vmatmul.mubr.f32.gmra.mrb[0].mxu0 %v1159
  %v1275 = vpop.f32.mrb[0].mxu0
  %v1276 = vadd.f32 0.0, %v1275
  %v1277 = vpop.f32.mrb[0].mxu0
  %v1278 = vadd.f32 0.0, %v1277
  %1279 = vdwg.mxu0
  %1280 = vmatprep.subr.mxu0 %v1124
  %1281 = vmatpush1.msra.mxu0 %v1123
  %1282 = vmatprep.subr.mxu0 0.0
  %1283 = vmatpush1.msra.mxu0 0.0
  %1284 = vmatprep.subr.mxu0 0.0
  %1285 = vmatpush1.msra.mxu0 0.0
  %1286 = vmatprep.subr.mxu0 0.0
  %1287 = vmatpush1.msra.mxu0 0.0
  %1288 = vmatprep.subr.mxu0 0.0
  %1289 = vmatpush1.msra.mxu0 0.0
  %1290 = vmatprep.subr.mxu0 0.0
  %1291 = vmatpush1.msra.mxu0 0.0
  %1292 = vmatprep.subr.mxu0 0.0
  %1293 = vmatpush1.msra.mxu0 0.0
  %1294 = vmatprep.subr.mxu0 0.0
  %1295 = vmatpush1.msra.mxu0 0.0
  %1296 = vmatprep.subr.mxu0 0.0
  %1297 = vmatpush1.msra.mxu0 0.0
  %1298 = vmatprep.subr.mxu0 0.0
  %1299 = vmatpush1.msra.mxu0 0.0
  %1300 = vmatprep.subr.mxu0 0.0
  %1301 = vmatpush1.msra.mxu0 0.0
  %1302 = vmatprep.subr.mxu0 0.0
  %1303 = vmatpush1.msra.mxu0 0.0
  %1304 = vmatprep.subr.mxu0 0.0
  %1305 = vmatpush1.msra.mxu0 0.0
  %1306 = vmatprep.subr.mxu0 0.0
  %1307 = vmatpush1.msra.mxu0 0.0
  %1308 = vmatprep.subr.mxu0 0.0
  %1309 = vmatpush1.msra.mxu0 0.0
  %1310 = vmatprep.subr.mxu0 0.0
  %1311 = vmatpush1.msra.mxu0 0.0
  %1312 = vmatprep.subr.mxu0 0.0
  %1313 = vmatpush1.msra.mxu0 0.0
  %1314 = vmatprep.subr.mxu0 0.0
  %1315 = vmatpush1.msra.mxu0 0.0
  %1316 = vmatprep.subr.mxu0 0.0
  %1317 = vmatpush1.msra.mxu0 0.0
  %1318 = vmatprep.subr.mxu0 0.0
  %1319 = vmatpush1.msra.mxu0 0.0
  %1320 = vmatprep.subr.mxu0 0.0
  %1321 = vmatpush1.msra.mxu0 0.0
  %1322 = vmatprep.subr.mxu0 0.0
  %1323 = vmatpush1.msra.mxu0 0.0
  %1324 = vmatprep.subr.mxu0 0.0
  %1325 = vmatpush1.msra.mxu0 0.0
  %1326 = vmatprep.subr.mxu0 0.0
  %1327 = vmatpush1.msra.mxu0 0.0
  %1328 = vmatprep.subr.mxu0 0.0
  %1329 = vmatpush1.msra.mxu0 0.0
  %1330 = vmatprep.subr.mxu0 0.0
  %1331 = vmatpush1.msra.mxu0 0.0
  %1332 = vmatprep.subr.mxu0 0.0
  %1333 = vmatpush1.msra.mxu0 0.0
  %1334 = vmatprep.subr.mxu0 0.0
  %1335 = vmatpush1.msra.mxu0 0.0
  %1336 = vmatprep.subr.mxu0 0.0
  %1337 = vmatpush1.msra.mxu0 0.0
  %1338 = vmatprep.subr.mxu0 0.0
  %1339 = vmatpush1.msra.mxu0 0.0
  %1340 = vmatprep.subr.mxu0 0.0
  %1341 = vmatpush1.msra.mxu0 0.0
  %1342 = vmatprep.subr.mxu0 0.0
  %1343 = vmatpush1.msra.mxu0 0.0
  %1344 = vmatprep.mubr.f32.mxu0 0.0
  %1345 = vmatmul.mubr.f32.gmra.mrb[0].mxu0 %v1135
  %v1346 = vpop.f32.mrb[0].mxu0
  %v1347 = vadd.f32 0.0, %v1346
  %v1348 = vpop.f32.mrb[0].mxu0
  %v1349 = vadd.f32 0.0, %v1348
  %1350 = vmatprep.mubr.f32.mxu0 0.0
  %1351 = vmatmul.mubr.f32.gmra.mrb[0].mxu0 %v1138
  %v1352 = vpop.f32.mrb[0].mxu0
  %v1353 = vadd.f32 0.0, %v1352
  %v1354 = vpop.f32.mrb[0].mxu0
  %v1355 = vadd.f32 0.0, %v1354
  %1356 = vmatprep.mubr.f32.mxu0 0.0
  %1357 = vmatmul.mubr.f32.gmra.mrb[0].mxu0 %v1141
  %v1358 = vpop.f32.mrb[0].mxu0
  %v1359 = vadd.f32 0.0, %v1358
  %v1360 = vpop.f32.mrb[0].mxu0
  %v1361 = vadd.f32 0.0, %v1360
  %1362 = vmatprep.mubr.f32.mxu0 0.0
  %1363 = vmatmul.mubr.f32.gmra.mrb[0].mxu0 %v1144
  %v1364 = vpop.f32.mrb[0].mxu0
  %v1365 = vadd.f32 0.0, %v1364
  %v1366 = vpop.f32.mrb[0].mxu0
  %v1367 = vadd.f32 0.0, %v1366
  %1368 = vmatprep.mubr.f32.mxu0 0.0
  %1369 = vmatmul.mubr.f32.gmra.mrb[0].mxu0 %v1147
  %v1370 = vpop.f32.mrb[0].mxu0
  %v1371 = vadd.f32 0.0, %v1370
  %v1372 = vpop.f32.mrb[0].mxu0
  %v1373 = vadd.f32 0.0, %v1372
  %1374 = vmatprep.mubr.f32.mxu0 0.0
  %1375 = vmatmul.mubr.f32.gmra.mrb[0].mxu0 %v1150
  %v1376 = vpop.f32.mrb[0].mxu0
  %v1377 = vadd.f32 0.0, %v1376
  %v1378 = vpop.f32.mrb[0].mxu0
  %v1379 = vadd.f32 0.0, %v1378
  %1380 = vmatprep.mubr.f32.mxu0 0.0
  %1381 = vmatmul.mubr.f32.gmra.mrb[0].mxu0 %v1153
  %v1382 = vpop.f32.mrb[0].mxu0
  %v1383 = vadd.f32 0.0, %v1382
  %v1384 = vpop.f32.mrb[0].mxu0
  %v1385 = vadd.f32 0.0, %v1384
  %1386 = vmatprep.mubr.f32.mxu0 0.0
  %1387 = vmatmul.mubr.f32.gmra.mrb[0].mxu0 %v1156
  %v1388 = vpop.f32.mrb[0].mxu0
  %v1389 = vadd.f32 0.0, %v1388
  %v1390 = vpop.f32.mrb[0].mxu0
  %v1391 = vadd.f32 0.0, %v1390
  %1392 = vmatprep.mubr.f32.mxu0 0.0
  %1393 = vmatmul.mubr.f32.gmra.mrb[0].mxu0 %v1159
  %v1394 = vpop.f32.mrb[0].mxu0
  %v1395 = vadd.f32 0.0, %v1394
  %v1396 = vpop.f32.mrb[0].mxu0
  %v1397 = vadd.f32 0.0, %v1396
  %1398 = vdwg.mxu0
  %1399 = vst [vmem:[#allocation2 + $0x8] sm:$0xff] %v1228
  %1400 = vst [vmem:[#allocation2 + $0x10] sm:$0xff] %v1230
  %1401 = vst [vmem:[#allocation2 + $0x18] sm:$0xff] %v1347
  %1402 = vst [vmem:[#allocation2 + $0x20] sm:$0xff] %v1349
  %1403 = vst [vmem:[#allocation2 + $0x38] sm:$0xff] %v1234
  %1404 = vst [vmem:[#allocation2 + $0x40] sm:$0xff] %v1236
  %1405 = vst [vmem:[#allocation2 + $0x48] sm:$0xff] %v1353
  %1406 = vst [vmem:[#allocation2 + $0x50] sm:$0xff] %v1355
  %1407 = vst [vmem:[#allocation2 + $0x68] sm:$0xff] %v1240
  %1408 = vst [vmem:[#allocation2 + $0x70] sm:$0xff] %v1242
  %1409 = vst [vmem:[#allocation2 + $0x78] sm:$0xff] %v1359
  %1410 = vst [vmem:[#allocation2 + $0x80] sm:$0xff] %v1361
  %1411 = vst [vmem:[#allocation2 + $0x98] sm:$0xff] %v1246
  %1412 = vst [vmem:[#allocation2 + $0xa0] sm:$0xff] %v1248
  %1413 = vst [vmem:[#allocation2 + $0xa8] sm:$0xff] %v1365
  %1414 = vst [vmem:[#allocation2 + $0xb0] sm:$0xff] %v1367
  %1415 = vst [vmem:[#allocation2 + $0xc8] sm:$0xff] %v1252
  %1416 = vst [vmem:[#allocation2 + $0xd0] sm:$0xff] %v1254
  %1417 = vst [vmem:[#allocation2 + $0xd8] sm:$0xff] %v1371
  %1418 = vst [vmem:[#allocation2 + $0xe0] sm:$0xff] %v1373
  %1419 = vst [vmem:[#allocation2 + $0xf8] sm:$0xff] %v1258
  %1420 = vst [vmem:[#allocation2 + $0x100] sm:$0xff] %v1260
  %1421 = vst [vmem:[#allocation2 + $0x108] sm:$0xff] %v1377
  %1422 = vst [vmem:[#allocation2 + $0x110] sm:$0xff] %v1379
  %1423 = vst [vmem:[#allocation2 + $0x128] sm:$0xff] %v1264
  %1424 = vst [vmem:[#allocation2 + $0x130] sm:$0xff] %v1266
  %1425 = vst [vmem:[#allocation2 + $0x138] sm:$0xff] %v1383
  %1426 = vst [vmem:[#allocation2 + $0x140] sm:$0xff] %v1385
  %1427 = vst [vmem:[#allocation2 + $0x158] sm:$0xff] %v1270
  %1428 = vst [vmem:[#allocation2 + $0x160] sm:$0xff] %v1272
  %1429 = vst [vmem:[#allocation2 + $0x168] sm:$0xff] %v1389
  %1430 = vst [vmem:[#allocation2 + $0x170] sm:$0xff] %v1391
  %1431 = vst [vmem:[#allocation2 + $0x188] sm:$0xff] %v1276
  %1432 = vst [vmem:[#allocation2 + $0x190] sm:$0xff] %v1278
  %1433 = vst [vmem:[#allocation2 + $0x198] sm:$0xff] %v1395
  %1434 = vst [vmem:[#allocation2 + $0x1a0] sm:$0xff] %v1397
  %v1435 = vld [vmem:[#allocation2] sm:$0xff]
  %v1436 = vld [vmem:[#allocation2 + $0x8] sm:$0xff]
  %v1437 = vld [vmem:[#allocation2 + $0x10] sm:$0xff]
  %v1438 = vld [vmem:[#allocation2 + $0x18] sm:$0xff]
  %v1439 = vld [vmem:[#allocation2 + $0x20] sm:$0xff]
  %v1440 = vlaneseq
  %v1441 = vshrl.u32 %v1440, 7
  %v1442 = vsub.s32 0, %v1441
  %v1443 = vrot.slane %v29, %v1442
  %v1444 = vlaneseq
  %v1445 = vshrl.u32 %v1444, 7
  %v1446 = vsub.s32 0, %v1445
  %v1447 = vrot.slane %v30, %v1446
  %v1448 = vlaneseq
  %v1449 = vshrl.u32 %v1448, 7
  %v1450 = vsub.s32 0, %v1449
  %v1451 = vrot.slane %v31, %v1450
  %v1452 = vlaneseq
  %v1453 = vshrl.u32 %v1452, 7
  %v1454 = vsub.s32 0, %v1453
  %v1455 = vrot.slane %v32, %v1454
  %1460 = vrot.lane.b32.xlu0 %v1443, 111
  %v1461 = vpop.permute.xlu0 %1460
  %1462 = vrot.lane.b32.xlu0 %v1447, 111
  %v1463 = vpop.permute.xlu0 %1462
  %1464 = vrot.lane.b32.xlu0 %v1451, 111
  %v1465 = vpop.permute.xlu0 %1464
  %1466 = vrot.lane.b32.xlu0 %v1455, 111
  %v1467 = vpop.permute.xlu0 %1466
  %vm1468 = vcmask 908288
  %v1469 = vsel %vm1468, %v1461, %v1463
  %v1470 = vsel %vm1468, %v1463, %v1465
  %v1471 = vsel %vm1468, %v1465, %v1467
  %v1477 = vmul.f32 %v1435, %v1461
  %v1478 = vmul.f32 %v1436, %v1469
  %v1479 = vmul.f32 %v1437, %v1470
  %v1480 = vmul.f32 %v1438, %v1471
  %v1481 = vmul.f32 %v1439, %v1467
  %v1482 = vadd.f32 %v1477, 0.0
  %v1483 = vadd.f32 %v1478, 0.0
  %v1484 = vadd.f32 %v1479, 0.0
  %v1485 = vadd.f32 %v1480, 0.0
  %v1486 = vadd.f32 %v1481, 0.0
  %v1487 = vld [vmem:[#allocation2 + $0x30] sm:$0xff]
  %v1488 = vld [vmem:[#allocation2 + $0x38] sm:$0xff]
  %v1489 = vld [vmem:[#allocation2 + $0x40] sm:$0xff]
  %v1490 = vld [vmem:[#allocation2 + $0x48] sm:$0xff]
  %v1491 = vld [vmem:[#allocation2 + $0x50] sm:$0xff]
  %v1492 = vlaneseq
  %v1493 = vshrl.u32 %v1492, 7
  %v1494 = vsub.s32 1, %v1493
  %v1495 = vrot.slane %v29, %v1494
  %v1496 = vlaneseq
  %v1497 = vshrl.u32 %v1496, 7
  %v1498 = vsub.s32 1, %v1497
  %v1499 = vrot.slane %v30, %v1498
  %v1500 = vlaneseq
  %v1501 = vshrl.u32 %v1500, 7
  %v1502 = vsub.s32 1, %v1501
  %v1503 = vrot.slane %v31, %v1502
  %v1504 = vlaneseq
  %v1505 = vshrl.u32 %v1504, 7
  %v1506 = vsub.s32 1, %v1505
  %v1507 = vrot.slane %v32, %v1506
  %1512 = vrot.lane.b32.xlu0 %v1495, 112
  %v1513 = vpop.permute.xlu0 %1512
  %1514 = vrot.lane.b32.xlu0 %v1499, 112
  %v1515 = vpop.permute.xlu0 %1514
  %1516 = vrot.lane.b32.xlu0 %v1503, 112
  %v1517 = vpop.permute.xlu0 %1516
  %1518 = vrot.lane.b32.xlu0 %v1507, 112
  %v1519 = vpop.permute.xlu0 %1518
  %vm1520 = vcmask 916480
  %v1521 = vsel %vm1520, %v1513, %v1515
  %v1522 = vsel %vm1520, %v1515, %v1517
  %v1523 = vsel %vm1520, %v1517, %v1519
  %v1529 = vmul.f32 %v1487, %v1513
  %v1530 = vmul.f32 %v1488, %v1521
  %v1531 = vmul.f32 %v1489, %v1522
  %v1532 = vmul.f32 %v1490, %v1523
  %v1533 = vmul.f32 %v1491, %v1519
  %1539 = vrot.lane.b32.xlu0 %v1529, 127
  %v1540 = vpop.permute.xlu0 %1539
  %1541 = vrot.lane.b32.xlu0 %v1530, 127
  %v1542 = vpop.permute.xlu0 %1541
  %1543 = vrot.lane.b32.xlu0 %v1531, 127
  %v1544 = vpop.permute.xlu0 %1543
  %1545 = vrot.lane.b32.xlu0 %v1532, 127
  %v1546 = vpop.permute.xlu0 %1545
  %1547 = vrot.lane.b32.xlu0 %v1533, 127
  %v1548 = vpop.permute.xlu0 %1547
  %vm1549 = vcmask 1039360
  %v1550 = vsel %vm1549, %v1540, %v1542
  %v1551 = vsel %vm1549, %v1542, %v1544
  %v1552 = vsel %vm1549, %v1544, %v1546
  %v1553 = vsel %vm1549, %v1546, %v1548
  %v1559 = vadd.f32 %v1482, %v1550
  %v1560 = vadd.f32 %v1483, %v1551
  %v1561 = vadd.f32 %v1484, %v1552
  %v1562 = vadd.f32 %v1485, %v1553
  %v1563 = vadd.f32 %v1486, %v1548
  %v1564 = vld [vmem:[#allocation2 + $0x60] sm:$0xff]
  %v1565 = vld [vmem:[#allocation2 + $0x68] sm:$0xff]
  %v1566 = vld [vmem:[#allocation2 + $0x70] sm:$0xff]
  %v1567 = vld [vmem:[#allocation2 + $0x78] sm:$0xff]
  %v1568 = vld [vmem:[#allocation2 + $0x80] sm:$0xff]
  %v1569 = vlaneseq
  %v1570 = vshrl.u32 %v1569, 7
  %v1571 = vsub.s32 2, %v1570
  %v1572 = vrot.slane %v29, %v1571
  %v1573 = vlaneseq
  %v1574 = vshrl.u32 %v1573, 7
  %v1575 = vsub.s32 2, %v1574
  %v1576 = vrot.slane %v30, %v1575
  %v1577 = vlaneseq
  %v1578 = vshrl.u32 %v1577, 7
  %v1579 = vsub.s32 2, %v1578
  %v1580 = vrot.slane %v31, %v1579
  %v1581 = vlaneseq
  %v1582 = vshrl.u32 %v1581, 7
  %v1583 = vsub.s32 2, %v1582
  %v1584 = vrot.slane %v32, %v1583
  %1589 = vrot.lane.b32.xlu0 %v1572, 113
  %v1590 = vpop.permute.xlu0 %1589
  %1591 = vrot.lane.b32.xlu0 %v1576, 113
  %v1592 = vpop.permute.xlu0 %1591
  %1593 = vrot.lane.b32.xlu0 %v1580, 113
  %v1594 = vpop.permute.xlu0 %1593
  %1595 = vrot.lane.b32.xlu0 %v1584, 113
  %v1596 = vpop.permute.xlu0 %1595
  %vm1597 = vcmask 924672
  %v1598 = vsel %vm1597, %v1590, %v1592
  %v1599 = vsel %vm1597, %v1592, %v1594
  %v1600 = vsel %vm1597, %v1594, %v1596
  %v1606 = vmul.f32 %v1564, %v1590
  %v1607 = vmul.f32 %v1565, %v1598
  %v1608 = vmul.f32 %v1566, %v1599
  %v1609 = vmul.f32 %v1567, %v1600
  %v1610 = vmul.f32 %v1568, %v1596
  %1616 = vrot.lane.b32.xlu0 %v1606, 126
  %v1617 = vpop.permute.xlu0 %1616
  %1618 = vrot.lane.b32.xlu0 %v1607, 126
  %v1619 = vpop.permute.xlu0 %1618
  %1620 = vrot.lane.b32.xlu0 %v1608, 126
  %v1621 = vpop.permute.xlu0 %1620
  %1622 = vrot.lane.b32.xlu0 %v1609, 126
  %v1623 = vpop.permute.xlu0 %1622
  %1624 = vrot.lane.b32.xlu0 %v1610, 126
  %v1625 = vpop.permute.xlu0 %1624
  %vm1626 = vcmask 1031168
  %v1627 = vsel %vm1626, %v1617, %v1619
  %v1628 = vsel %vm1626, %v1619, %v1621
  %v1629 = vsel %vm1626, %v1621, %v1623
  %v1630 = vsel %vm1626, %v1623, %v1625
  %v1636 = vadd.f32 %v1559, %v1627
  %v1637 = vadd.f32 %v1560, %v1628
  %v1638 = vadd.f32 %v1561, %v1629
  %v1639 = vadd.f32 %v1562, %v1630
  %v1640 = vadd.f32 %v1563, %v1625
  %v1641 = vld [vmem:[#allocation2 + $0x90] sm:$0xff]
  %v1642 = vld [vmem:[#allocation2 + $0x98] sm:$0xff]
  %v1643 = vld [vmem:[#allocation2 + $0xa0] sm:$0xff]
  %v1644 = vld [vmem:[#allocation2 + $0xa8] sm:$0xff]
  %v1645 = vld [vmem:[#allocation2 + $0xb0] sm:$0xff]
  %v1646 = vlaneseq
  %v1647 = vshrl.u32 %v1646, 7
  %v1648 = vsub.s32 3, %v1647
  %v1649 = vrot.slane %v29, %v1648
  %v1650 = vlaneseq
  %v1651 = vshrl.u32 %v1650, 7
  %v1652 = vsub.s32 3, %v1651
  %v1653 = vrot.slane %v30, %v1652
  %v1654 = vlaneseq
  %v1655 = vshrl.u32 %v1654, 7
  %v1656 = vsub.s32 3, %v1655
  %v1657 = vrot.slane %v31, %v1656
  %v1658 = vlaneseq
  %v1659 = vshrl.u32 %v1658, 7
  %v1660 = vsub.s32 3, %v1659
  %v1661 = vrot.slane %v32, %v1660
  %1666 = vrot.lane.b32.xlu0 %v1649, 127
  %v1667 = vpop.permute.xlu0 %1666
  %1668 = vrot.lane.b32.xlu0 %v1653, 127
  %v1669 = vpop.permute.xlu0 %1668
  %1670 = vrot.lane.b32.xlu0 %v1657, 127
  %v1671 = vpop.permute.xlu0 %1670
  %1672 = vrot.lane.b32.xlu0 %v1661, 127
  %v1673 = vpop.permute.xlu0 %1672
  %v1674 = vsel %vm1549, %v1667, %v1669
  %v1675 = vsel %vm1549, %v1669, %v1671
  %v1676 = vsel %vm1549, %v1671, %v1673
  %v1682 = vmul.f32 %v1641, %v1667
  %v1683 = vmul.f32 %v1642, %v1674
  %v1684 = vmul.f32 %v1643, %v1675
  %v1685 = vmul.f32 %v1644, %v1676
  %v1686 = vmul.f32 %v1645, %v1673
  %1692 = vrot.lane.b32.xlu0 %v1682, 112
  %v1693 = vpop.permute.xlu0 %1692
  %1694 = vrot.lane.b32.xlu0 %v1683, 112
  %v1695 = vpop.permute.xlu0 %1694
  %1696 = vrot.lane.b32.xlu0 %v1684, 112
  %v1697 = vpop.permute.xlu0 %1696
  %1698 = vrot.lane.b32.xlu0 %v1685, 112
  %v1699 = vpop.permute.xlu0 %1698
  %1700 = vrot.lane.b32.xlu0 %v1686, 112
  %v1701 = vpop.permute.xlu0 %1700
  %v1702 = vsel %vm1520, %v1693, %v1695
  %v1703 = vsel %vm1520, %v1695, %v1697
  %v1704 = vsel %vm1520, %v1697, %v1699
  %v1705 = vsel %vm1520, %v1699, %v1701
  %v1711 = vadd.f32 %v1636, %v1702
  %v1712 = vadd.f32 %v1637, %v1703
  %v1713 = vadd.f32 %v1638, %v1704
  %v1714 = vadd.f32 %v1639, %v1705
  %v1715 = vadd.f32 %v1640, %v1701
  %v1716 = vld [vmem:[#allocation2 + $0xc8] sm:$0xff]
  %v1717 = vld [vmem:[#allocation2 + $0xd0] sm:$0xff]
  %v1718 = vld [vmem:[#allocation2 + $0xd8] sm:$0xff]
  %v1719 = vld [vmem:[#allocation2 + $0xe0] sm:$0xff]
  %v1720 = vlaneseq
  %v1721 = vshrl.u32 %v1720, 7
  %v1722 = vsub.s32 4, %v1721
  %v1723 = vrot.slane %v29, %v1722
  %v1724 = vlaneseq
  %v1725 = vshrl.u32 %v1724, 7
  %v1726 = vsub.s32 4, %v1725
  %v1727 = vrot.slane %v30, %v1726
  %v1728 = vlaneseq
  %v1729 = vshrl.u32 %v1728, 7
  %v1730 = vsub.s32 4, %v1729
  %v1731 = vrot.slane %v31, %v1730
  %v1732 = vlaneseq
  %v1733 = vshrl.u32 %v1732, 7
  %v1734 = vsub.s32 4, %v1733
  %v1735 = vrot.slane %v32, %v1734
  %v1736 = vmul.f32 %v1716, %v1723
  %v1737 = vmul.f32 %v1717, %v1727
  %v1738 = vmul.f32 %v1718, %v1731
  %v1739 = vmul.f32 %v1719, %v1735
  %1744 = vrot.lane.b32.xlu0 %v1736, 111
  %v1745 = vpop.permute.xlu0 %1744
  %1746 = vrot.lane.b32.xlu0 %v1737, 111
  %v1747 = vpop.permute.xlu0 %1746
  %1748 = vrot.lane.b32.xlu0 %v1738, 111
  %v1749 = vpop.permute.xlu0 %1748
  %1750 = vrot.lane.b32.xlu0 %v1739, 111
  %v1751 = vpop.permute.xlu0 %1750
  %v1752 = vsel %vm1468, %v1745, %v1747
  %v1753 = vsel %vm1468, %v1747, %v1749
  %v1754 = vsel %vm1468, %v1749, %v1751
  %v1760 = vadd.f32 %v1711, %v1745
  %v1761 = vadd.f32 %v1712, %v1752
  %v1762 = vadd.f32 %v1713, %v1753
  %v1763 = vadd.f32 %v1714, %v1754
  %v1764 = vadd.f32 %v1715, %v1751
  %v1765 = vld [vmem:[#allocation2 + $0xf8] sm:$0xff]
  %v1766 = vld [vmem:[#allocation2 + $0x100] sm:$0xff]
  %v1767 = vld [vmem:[#allocation2 + $0x108] sm:$0xff]
  %v1768 = vld [vmem:[#allocation2 + $0x110] sm:$0xff]
  %v1769 = vld [vmem:[#allocation2 + $0x118] sm:$0xff]
  %v1770 = vlaneseq
  %v1771 = vshrl.u32 %v1770, 7
  %v1772 = vsub.s32 5, %v1771
  %v1773 = vrot.slane %v29, %v1772
  %v1774 = vlaneseq
  %v1775 = vshrl.u32 %v1774, 7
  %v1776 = vsub.s32 5, %v1775
  %v1777 = vrot.slane %v30, %v1776
  %v1778 = vlaneseq
  %v1779 = vshrl.u32 %v1778, 7
  %v1780 = vsub.s32 5, %v1779
  %v1781 = vrot.slane %v31, %v1780
  %v1782 = vlaneseq
  %v1783 = vshrl.u32 %v1782, 7
  %v1784 = vsub.s32 5, %v1783
  %v1785 = vrot.slane %v32, %v1784
  %1790 = vrot.lane.b32.xlu0 %v1773, 1
  %v1791 = vpop.permute.xlu0 %1790
  %1792 = vrot.lane.b32.xlu0 %v1777, 1
  %v1793 = vpop.permute.xlu0 %1792
  %1794 = vrot.lane.b32.xlu0 %v1781, 1
  %v1795 = vpop.permute.xlu0 %1794
  %1796 = vrot.lane.b32.xlu0 %v1785, 1
  %v1797 = vpop.permute.xlu0 %1796
  %vm1798 = vcmask 7168
  %v1799 = vsel %vm1798, %v1791, %v1793
  %v1800 = vsel %vm1798, %v1793, %v1795
  %v1801 = vsel %vm1798, %v1795, %v1797
  %v1807 = vmul.f32 %v1765, %v1791
  %v1808 = vmul.f32 %v1766, %v1799
  %v1809 = vmul.f32 %v1767, %v1800
  %v1810 = vmul.f32 %v1768, %v1801
  %v1811 = vmul.f32 %v1769, %v1797
  %1817 = vrot.lane.b32.xlu0 %v1807, 110
  %v1818 = vpop.permute.xlu0 %1817
  %1819 = vrot.lane.b32.xlu0 %v1808, 110
  %v1820 = vpop.permute.xlu0 %1819
  %1821 = vrot.lane.b32.xlu0 %v1809, 110
  %v1822 = vpop.permute.xlu0 %1821
  %1823 = vrot.lane.b32.xlu0 %v1810, 110
  %v1824 = vpop.permute.xlu0 %1823
  %1825 = vrot.lane.b32.xlu0 %v1811, 110
  %v1826 = vpop.permute.xlu0 %1825
  %vm1827 = vcmask 900096
  %v1828 = vsel %vm1827, %v1818, %v1820
  %v1829 = vsel %vm1827, %v1820, %v1822
  %v1830 = vsel %vm1827, %v1822, %v1824
  %v1831 = vsel %vm1827, %v1824, %v1826
  %v1837 = vadd.f32 %v1760, %v1818
  %v1838 = vadd.f32 %v1761, %v1828
  %v1839 = vadd.f32 %v1762, %v1829
  %v1840 = vadd.f32 %v1763, %v1830
  %v1841 = vadd.f32 %v1764, %v1831
  %v1842 = vld [vmem:[#allocation2 + $0x128] sm:$0xff]
  %v1843 = vld [vmem:[#allocation2 + $0x130] sm:$0xff]
  %v1844 = vld [vmem:[#allocation2 + $0x138] sm:$0xff]
  %v1845 = vld [vmem:[#allocation2 + $0x140] sm:$0xff]
  %v1846 = vld [vmem:[#allocation2 + $0x148] sm:$0xff]
  %v1847 = vlaneseq
  %v1848 = vshrl.u32 %v1847, 7
  %v1849 = vsub.s32 6, %v1848
  %v1850 = vrot.slane %v29, %v1849
  %v1851 = vlaneseq
  %v1852 = vshrl.u32 %v1851, 7
  %v1853 = vsub.s32 6, %v1852
  %v1854 = vrot.slane %v30, %v1853
  %v1855 = vlaneseq
  %v1856 = vshrl.u32 %v1855, 7
  %v1857 = vsub.s32 6, %v1856
  %v1858 = vrot.slane %v31, %v1857
  %v1859 = vlaneseq
  %v1860 = vshrl.u32 %v1859, 7
  %v1861 = vsub.s32 6, %v1860
  %v1862 = vrot.slane %v32, %v1861
  %1867 = vrot.lane.b32.xlu0 %v1850, 15
  %v1868 = vpop.permute.xlu0 %1867
  %1869 = vrot.lane.b32.xlu0 %v1854, 15
  %v1870 = vpop.permute.xlu0 %1869
  %1871 = vrot.lane.b32.xlu0 %v1858, 15
  %v1872 = vpop.permute.xlu0 %1871
  %1873 = vrot.lane.b32.xlu0 %v1862, 15
  %v1874 = vpop.permute.xlu0 %1873
  %vm1875 = vcmask 121856
  %v1876 = vsel %vm1875, %v1868, %v1870
  %v1877 = vsel %vm1875, %v1870, %v1872
  %v1878 = vsel %vm1875, %v1872, %v1874
  %v1884 = vmul.f32 %v1842, %v1868
  %v1885 = vmul.f32 %v1843, %v1876
  %v1886 = vmul.f32 %v1844, %v1877
  %v1887 = vmul.f32 %v1845, %v1878
  %v1888 = vmul.f32 %v1846, %v1874
  %1894 = vrot.lane.b32.xlu0 %v1884, 96
  %v1895 = vpop.permute.xlu0 %1894
  %1896 = vrot.lane.b32.xlu0 %v1885, 96
  %v1897 = vpop.permute.xlu0 %1896
  %1898 = vrot.lane.b32.xlu0 %v1886, 96
  %v1899 = vpop.permute.xlu0 %1898
  %1900 = vrot.lane.b32.xlu0 %v1887, 96
  %v1901 = vpop.permute.xlu0 %1900
  %1902 = vrot.lane.b32.xlu0 %v1888, 96
  %v1903 = vpop.permute.xlu0 %1902
  %vm1904 = vcmask 785408
  %v1905 = vsel %vm1904, %v1895, %v1897
  %v1906 = vsel %vm1904, %v1897, %v1899
  %v1907 = vsel %vm1904, %v1899, %v1901
  %v1908 = vsel %vm1904, %v1901, %v1903
  %v1914 = vadd.f32 %v1837, %v1895
  %v1915 = vadd.f32 %v1838, %v1905
  %v1916 = vadd.f32 %v1839, %v1906
  %v1917 = vadd.f32 %v1840, %v1907
  %v1918 = vadd.f32 %v1841, %v1908
  %v1919 = vld [vmem:[#allocation2 + $0x158] sm:$0xff]
  %v1920 = vld [vmem:[#allocation2 + $0x160] sm:$0xff]
  %v1921 = vld [vmem:[#allocation2 + $0x168] sm:$0xff]
  %v1922 = vld [vmem:[#allocation2 + $0x170] sm:$0xff]
  %v1923 = vld [vmem:[#allocation2 + $0x178] sm:$0xff]
  %v1924 = vlaneseq
  %v1925 = vshrl.u32 %v1924, 7
  %v1926 = vsub.s32 7, %v1925
  %v1927 = vrot.slane %v29, %v1926
  %v1928 = vlaneseq
  %v1929 = vshrl.u32 %v1928, 7
  %v1930 = vsub.s32 7, %v1929
  %v1931 = vrot.slane %v30, %v1930
  %v1932 = vlaneseq
  %v1933 = vshrl.u32 %v1932, 7
  %v1934 = vsub.s32 7, %v1933
  %v1935 = vrot.slane %v31, %v1934
  %v1936 = vlaneseq
  %v1937 = vshrl.u32 %v1936, 7
  %v1938 = vsub.s32 7, %v1937
  %v1939 = vrot.slane %v32, %v1938
  %1944 = vrot.lane.b32.xlu0 %v1927, 16
  %v1945 = vpop.permute.xlu0 %1944
  %1946 = vrot.lane.b32.xlu0 %v1931, 16
  %v1947 = vpop.permute.xlu0 %1946
  %1948 = vrot.lane.b32.xlu0 %v1935, 16
  %v1949 = vpop.permute.xlu0 %1948
  %1950 = vrot.lane.b32.xlu0 %v1939, 16
  %v1951 = vpop.permute.xlu0 %1950
  %vm1952 = vcmask 130048
  %v1953 = vsel %vm1952, %v1945, %v1947
  %v1954 = vsel %vm1952, %v1947, %v1949
  %v1955 = vsel %vm1952, %v1949, %v1951
  %v1961 = vmul.f32 %v1919, %v1945
  %v1962 = vmul.f32 %v1920, %v1953
  %v1963 = vmul.f32 %v1921, %v1954
  %v1964 = vmul.f32 %v1922, %v1955
  %v1965 = vmul.f32 %v1923, %v1951
  %1971 = vrot.lane.b32.xlu0 %v1961, 95
  %v1972 = vpop.permute.xlu0 %1971
  %1973 = vrot.lane.b32.xlu0 %v1962, 95
  %v1974 = vpop.permute.xlu0 %1973
  %1975 = vrot.lane.b32.xlu0 %v1963, 95
  %v1976 = vpop.permute.xlu0 %1975
  %1977 = vrot.lane.b32.xlu0 %v1964, 95
  %v1978 = vpop.permute.xlu0 %1977
  %1979 = vrot.lane.b32.xlu0 %v1965, 95
  %v1980 = vpop.permute.xlu0 %1979
  %vm1981 = vcmask 777216
  %v1982 = vsel %vm1981, %v1972, %v1974
  %v1983 = vsel %vm1981, %v1974, %v1976
  %v1984 = vsel %vm1981, %v1976, %v1978
  %v1985 = vsel %vm1981, %v1978, %v1980
  %v1991 = vadd.f32 %v1914, %v1972
  %v1992 = vadd.f32 %v1915, %v1982
  %v1993 = vadd.f32 %v1916, %v1983
  %v1994 = vadd.f32 %v1917, %v1984
  %v1995 = vadd.f32 %v1918, %v1985
  %v1996 = vld [vmem:[#allocation2 + $0x188] sm:$0xff]
  %v1997 = vld [vmem:[#allocation2 + $0x190] sm:$0xff]
  %v1998 = vld [vmem:[#allocation2 + $0x198] sm:$0xff]
  %v1999 = vld [vmem:[#allocation2 + $0x1a0] sm:$0xff]
  %v2000 = vld [vmem:[#allocation2 + $0x1a8] sm:$0xff]
  %v2001 = vlaneseq
  %v2002 = vshrl.u32 %v2001, 7
  %v2003 = vsub.s32 0, %v2002
  %v2004 = vrot.slane %v33, %v2003
  %v2005 = vlaneseq
  %v2006 = vshrl.u32 %v2005, 7
  %v2007 = vsub.s32 0, %v2006
  %v2008 = vrot.slane %v34, %v2007
  %v2009 = vlaneseq
  %v2010 = vshrl.u32 %v2009, 7
  %v2011 = vsub.s32 0, %v2010
  %v2012 = vrot.slane %v35, %v2011
  %v2013 = vlaneseq
  %v2014 = vshrl.u32 %v2013, 7
  %v2015 = vsub.s32 0, %v2014
  %v2016 = vrot.slane %v36, %v2015
  %2021 = vrot.lane.b32.xlu0 %v2004, 17
  %v2022 = vpop.permute.xlu0 %2021
  %2023 = vrot.lane.b32.xlu0 %v2008, 17
  %v2024 = vpop.permute.xlu0 %2023
  %2025 = vrot.lane.b32.xlu0 %v2012, 17
  %v2026 = vpop.permute.xlu0 %2025
  %2027 = vrot.lane.b32.xlu0 %v2016, 17
  %v2028 = vpop.permute.xlu0 %2027
  %vm2029 = vcmask 138240
  %v2030 = vsel %vm2029, %v2022, %v2024
  %v2031 = vsel %vm2029, %v2024, %v2026
  %v2032 = vsel %vm2029, %v2026, %v2028
  %v2038 = vmul.f32 %v1996, %v2022
  %v2039 = vmul.f32 %v1997, %v2030
  %v2040 = vmul.f32 %v1998, %v2031
  %v2041 = vmul.f32 %v1999, %v2032
  %v2042 = vmul.f32 %v2000, %v2028
  %2048 = vrot.lane.b32.xlu0 %v2038, 94
  %v2049 = vpop.permute.xlu0 %2048
  %2050 = vrot.lane.b32.xlu0 %v2039, 94
  %v2051 = vpop.permute.xlu0 %2050
  %2052 = vrot.lane.b32.xlu0 %v2040, 94
  %v2053 = vpop.permute.xlu0 %2052
  %2054 = vrot.lane.b32.xlu0 %v2041, 94
  %v2055 = vpop.permute.xlu0 %2054
  %2056 = vrot.lane.b32.xlu0 %v2042, 94
  %v2057 = vpop.permute.xlu0 %2056
  %vm2058 = vcmask 769024
  %v2059 = vsel %vm2058, %v2049, %v2051
  %v2060 = vsel %vm2058, %v2051, %v2053
  %v2061 = vsel %vm2058, %v2053, %v2055
  %v2062 = vsel %vm2058, %v2055, %v2057
  %v2068 = vadd.f32 %v1991, %v2049
  %v2069 = vadd.f32 %v1992, %v2059
  %v2070 = vadd.f32 %v1993, %v2060
  %v2071 = vadd.f32 %v1994, %v2061
  %v2072 = vadd.f32 %v1995, %v2062
  %2073 = vset.pattern.permute.xlu0 1
  %2074 = vperm.xlu0 %2073, %v37
  %v2075 = vpop.permute.xlu0 %2074
  %v2077 = vadd.f32 %v2068, %v2075
  %v2078 = vadd.f32 %v2069, %v2075
  %v2079 = vadd.f32 %v2070, %v2075
  %v2080 = vadd.f32 %v2071, %v2075
  %v2081 = vadd.f32 %v2072, %v2075
  %2087 = vrot.lane.b32.xlu0 %v2077, 17
  %v2088 = vpop.permute.xlu0 %2087
  %2089 = vrot.lane.b32.xlu0 %v2078, 17
  %v2090 = vpop.permute.xlu0 %2089
  %2091 = vrot.lane.b32.xlu0 %v2079, 17
  %v2092 = vpop.permute.xlu0 %2091
  %2093 = vrot.lane.b32.xlu0 %v2080, 17
  %v2094 = vpop.permute.xlu0 %2093
  %2095 = vrot.lane.b32.xlu0 %v2081, 17
  %v2096 = vpop.permute.xlu0 %2095
  %v2097 = vsel %vm2029, %v2088, %v2090
  %v2098 = vsel %vm2029, %v2090, %v2092
  %v2099 = vsel %vm2029, %v2092, %v2094
  %v2100 = vsel %vm2029, %v2094, %v2096
  %v2105 = vadd.f32 %v2097, %v2098
  %v2106 = vadd.f32 %v2105, %v2099
  %v2107 = vadd.f32 %v2106, %v2100
  %2108 = vadd.xlane.f32.xlu0 %v2107
  %v2109 = vpop.xlane.xlu0 %2108
  %v2110 = vmul.f32 %v2109, 0.001953125
  %v2111 = vsub.f32 %v2077, %v2110
  %v2112 = vsub.f32 %v2078, %v2110
  %v2113 = vsub.f32 %v2079, %v2110
  %v2114 = vsub.f32 %v2080, %v2110
  %v2115 = vsub.f32 %v2081, %v2110
  %v2116 = vmul.f32 %v2111, %v2111
  %v2117 = vmul.f32 %v2112, %v2112
  %v2118 = vmul.f32 %v2113, %v2113
  %v2119 = vmul.f32 %v2114, %v2114
  %v2120 = vmul.f32 %v2115, %v2115
  %2126 = vrot.lane.b32.xlu0 %v2116, 17
  %v2127 = vpop.permute.xlu0 %2126
  %2128 = vrot.lane.b32.xlu0 %v2117, 17
  %v2129 = vpop.permute.xlu0 %2128
  %2130 = vrot.lane.b32.xlu0 %v2118, 17
  %v2131 = vpop.permute.xlu0 %2130
  %2132 = vrot.lane.b32.xlu0 %v2119, 17
  %v2133 = vpop.permute.xlu0 %2132
  %2134 = vrot.lane.b32.xlu0 %v2120, 17
  %v2135 = vpop.permute.xlu0 %2134
  %v2136 = vsel %vm2029, %v2127, %v2129
  %v2137 = vsel %vm2029, %v2129, %v2131
  %v2138 = vsel %vm2029, %v2131, %v2133
  %v2139 = vsel %vm2029, %v2133, %v2135
  %v2144 = vadd.f32 %v2136, %v2137
  %v2145 = vadd.f32 %v2144, %v2138
  %v2146 = vadd.f32 %v2145, %v2139
  %2147 = vadd.xlane.f32.xlu0 %v2146
  %v2148 = vpop.xlane.xlu0 %2147
  %v2149 = vmul.f32 %v2148, 0.001953125
  %v2150 = vadd.f32 %v2149, 1e-05
  %v2151 = vrsqrt.pop %v2150
  %v2152 = vmul.f32 %v37, %v2151
  %2154 = vset.pattern.permute.xlu0 3
  %2155 = vperm.xlu0 %2154, %v2152
  %v2156 = vpop.permute.xlu0 %2155
  %v2158 = vmul.f32 %v2111, %v2156
  %v2159 = vmul.f32 %v2112, %v2156
  %v2160 = vmul.f32 %v2113, %v2156
  %v2161 = vmul.f32 %v2114, %v2156
  %v2162 = vmul.f32 %v2115, %v2156
  %2163 = vset.pattern.permute.xlu0 4
  %2164 = vperm.xlu0 %2163, %v37
  %v2165 = vpop.permute.xlu0 %2164
  %v2167 = vadd.f32 %v2158, %v2165
  %v2168 = vadd.f32 %v2159, %v2165
  %v2169 = vadd.f32 %v2160, %v2165
  %v2170 = vadd.f32 %v2161, %v2165
  %v2171 = vadd.f32 %v2162, %v2165
  %v2172 = vmax.f32 %v2167, 0.0
  %v2173 = vmax.f32 %v2168, 0.0
  %v2174 = vmax.f32 %v2169, 0.0
  %v2175 = vmax.f32 %v2170, 0.0
  %v2176 = vmax.f32 %v2171, 0.0
  %v2177 = vld [vmem:[%s5] sm:$0xff]
  %v2178 = vld [vmem:[%s5 + $0x8] sm:$0xff]
  %v2179 = vld [vmem:[%s5 + $0x10] sm:$0xff]
  %v2180 = vld [vmem:[%s5 + $0x18] sm:$0xff]
  %v2181 = vld [vmem:[%s5 + $0x20] sm:$0xff]
  %v2182 = vld [vmem:[%s5 + $0x28] sm:$0xff]
  %v2183 = vld [vmem:[%s5 + $0x30] sm:$0xff]
  %v2184 = vld [vmem:[%s5 + $0x38] sm:$0xff]
  %v2185 = vld [vmem:[%s5 + $0x40] sm:$0xff]
  %2191 = vrot.lane.b32.xlu0 %v2172, 17
  %v2192 = vpop.permute.xlu0 %2191
  %2193 = vrot.lane.b32.xlu0 %v2173, 17
  %v2194 = vpop.permute.xlu0 %2193
  %2195 = vrot.lane.b32.xlu0 %v2174, 17
  %v2196 = vpop.permute.xlu0 %2195
  %2197 = vrot.lane.b32.xlu0 %v2175, 17
  %v2198 = vpop.permute.xlu0 %2197
  %2199 = vrot.lane.b32.xlu0 %v2176, 17
  %v2200 = vpop.permute.xlu0 %2199
  %v2201 = vsel %vm2029, %v2192, %v2194
  %v2202 = vsel %vm2029, %v2194, %v2196
  %v2203 = vsel %vm2029, %v2196, %v2198
  %v2204 = vsel %vm2029, %v2198, %v2200
  %v2210 = vsel %vm61, %v2177, 0
  %v2213 = vsel %vm61, %v2178, 0
  %v2216 = vsel %vm61, %v2179, 0
  %v2219 = vsel %vm61, %v2180, 0
  %v2222 = vsel %vm61, %v2181, 0
  %v2225 = vsel %vm61, %v2182, 0
  %v2228 = vsel %vm61, %v2183, 0
  %v2231 = vsel %vm61, %v2184, 0
  %v2234 = vsel %vm61, %v2185, 0
  %2236 = vmatprep.subr.mxu0 %v2202
  %2237 = vmatpush1.msra.mxu0 %v2201
  %2238 = vmatprep.subr.mxu0 0.0
  %2239 = vmatpush1.msra.mxu0 0.0
  %2240 = vmatprep.subr.mxu0 0.0
  %2241 = vmatpush1.msra.mxu0 0.0
  %2242 = vmatprep.subr.mxu0 0.0
  %2243 = vmatpush1.msra.mxu0 0.0
  %2244 = vmatprep.subr.mxu0 0.0
  %2245 = vmatpush1.msra.mxu0 0.0
  %2246 = vmatprep.subr.mxu0 0.0
  %2247 = vmatpush1.msra.mxu0 0.0
  %2248 = vmatprep.subr.mxu0 0.0
  %2249 = vmatpush1.msra.mxu0 0.0
  %2250 = vmatprep.subr.mxu0 0.0
  %2251 = vmatpush1.msra.mxu0 0.0
  %2252 = vmatprep.subr.mxu0 0.0
  %2253 = vmatpush1.msra.mxu0 0.0
  %2254 = vmatprep.subr.mxu0 0.0
  %2255 = vmatpush1.msra.mxu0 0.0
  %2256 = vmatprep.subr.mxu0 0.0
  %2257 = vmatpush1.msra.mxu0 0.0
  %2258 = vmatprep.subr.mxu0 0.0
  %2259 = vmatpush1.msra.mxu0 0.0
  %2260 = vmatprep.subr.mxu0 0.0
  %2261 = vmatpush1.msra.mxu0 0.0
  %2262 = vmatprep.subr.mxu0 0.0
  %2263 = vmatpush1.msra.mxu0 0.0
  %2264 = vmatprep.subr.mxu0 0.0
  %2265 = vmatpush1.msra.mxu0 0.0
  %2266 = vmatprep.subr.mxu0 0.0
  %2267 = vmatpush1.msra.mxu0 0.0
  %2268 = vmatprep.subr.mxu0 0.0
  %2269 = vmatpush1.msra.mxu0 0.0
  %2270 = vmatprep.subr.mxu0 0.0
  %2271 = vmatpush1.msra.mxu0 0.0
  %2272 = vmatprep.subr.mxu0 0.0
  %2273 = vmatpush1.msra.mxu0 0.0
  %2274 = vmatprep.subr.mxu0 0.0
  %2275 = vmatpush1.msra.mxu0 0.0
  %2276 = vmatprep.subr.mxu0 0.0
  %2277 = vmatpush1.msra.mxu0 0.0
  %2278 = vmatprep.subr.mxu0 0.0
  %2279 = vmatpush1.msra.mxu0 0.0
  %2280 = vmatprep.subr.mxu0 0.0
  %2281 = vmatpush1.msra.mxu0 0.0
  %2282 = vmatprep.subr.mxu0 0.0
  %2283 = vmatpush1.msra.mxu0 0.0
  %2284 = vmatprep.subr.mxu0 0.0
  %2285 = vmatpush1.msra.mxu0 0.0
  %2286 = vmatprep.subr.mxu0 0.0
  %2287 = vmatpush1.msra.mxu0 0.0
  %2288 = vmatprep.subr.mxu0 0.0
  %2289 = vmatpush1.msra.mxu0 0.0
  %2290 = vmatprep.subr.mxu0 0.0
  %2291 = vmatpush1.msra.mxu0 0.0
  %2292 = vmatprep.subr.mxu0 0.0
  %2293 = vmatpush1.msra.mxu0 0.0
  %2294 = vmatprep.subr.mxu0 0.0
  %2295 = vmatpush1.msra.mxu0 0.0
  %2296 = vmatprep.subr.mxu0 0.0
  %2297 = vmatpush1.msra.mxu0 0.0
  %2298 = vmatprep.subr.mxu0 0.0
  %2299 = vmatpush1.msra.mxu0 0.0
  %2300 = vmatprep.mubr.f32.mxu0 0.0
  %2301 = vmatmul.mubr.f32.gmra.mrb[0].mxu0 %v2210
  %v2302 = vpop.f32.mrb[0].mxu0
  %v2303 = vadd.f32 0.0, %v2302
  %v2304 = vpop.f32.mrb[0].mxu0
  %v2305 = vadd.f32 0.0, %v2304
  %2306 = vmatprep.mubr.f32.mxu0 0.0
  %2307 = vmatmul.mubr.f32.gmra.mrb[0].mxu0 %v2213
  %v2308 = vpop.f32.mrb[0].mxu0
  %v2309 = vadd.f32 0.0, %v2308
  %v2310 = vpop.f32.mrb[0].mxu0
  %v2311 = vadd.f32 0.0, %v2310
  %2312 = vmatprep.mubr.f32.mxu0 0.0
  %2313 = vmatmul.mubr.f32.gmra.mrb[0].mxu0 %v2216
  %v2314 = vpop.f32.mrb[0].mxu0
  %v2315 = vadd.f32 0.0, %v2314
  %v2316 = vpop.f32.mrb[0].mxu0
  %v2317 = vadd.f32 0.0, %v2316
  %2318 = vmatprep.mubr.f32.mxu0 0.0
  %2319 = vmatmul.mubr.f32.gmra.mrb[0].mxu0 %v2219
  %v2320 = vpop.f32.mrb[0].mxu0
  %v2321 = vadd.f32 0.0, %v2320
  %v2322 = vpop.f32.mrb[0].mxu0
  %v2323 = vadd.f32 0.0, %v2322
  %2324 = vmatprep.mubr.f32.mxu0 0.0
  %2325 = vmatmul.mubr.f32.gmra.mrb[0].mxu0 %v2222
  %v2326 = vpop.f32.mrb[0].mxu0
  %v2327 = vadd.f32 0.0, %v2326
  %v2328 = vpop.f32.mrb[0].mxu0
  %v2329 = vadd.f32 0.0, %v2328
  %2330 = vmatprep.mubr.f32.mxu0 0.0
  %2331 = vmatmul.mubr.f32.gmra.mrb[0].mxu0 %v2225
  %v2332 = vpop.f32.mrb[0].mxu0
  %v2333 = vadd.f32 0.0, %v2332
  %v2334 = vpop.f32.mrb[0].mxu0
  %v2335 = vadd.f32 0.0, %v2334
  %2336 = vmatprep.mubr.f32.mxu0 0.0
  %2337 = vmatmul.mubr.f32.gmra.mrb[0].mxu0 %v2228
  %v2338 = vpop.f32.mrb[0].mxu0
  %v2339 = vadd.f32 0.0, %v2338
  %v2340 = vpop.f32.mrb[0].mxu0
  %v2341 = vadd.f32 0.0, %v2340
  %2342 = vmatprep.mubr.f32.mxu0 0.0
  %2343 = vmatmul.mubr.f32.gmra.mrb[0].mxu0 %v2231
  %v2344 = vpop.f32.mrb[0].mxu0
  %v2345 = vadd.f32 0.0, %v2344
  %v2346 = vpop.f32.mrb[0].mxu0
  %v2347 = vadd.f32 0.0, %v2346
  %2348 = vmatprep.mubr.f32.mxu0 0.0
  %2349 = vmatmul.mubr.f32.gmra.mrb[0].mxu0 %v2234
  %v2350 = vpop.f32.mrb[0].mxu0
  %v2351 = vadd.f32 0.0, %v2350
  %v2352 = vpop.f32.mrb[0].mxu0
  %v2353 = vadd.f32 0.0, %v2352
  %2354 = vdwg.mxu0
  %2355 = vmatprep.subr.mxu0 %v2204
  %2356 = vmatpush1.msra.mxu0 %v2203
  %2357 = vmatprep.subr.mxu0 0.0
  %2358 = vmatpush1.msra.mxu0 0.0
  %2359 = vmatprep.subr.mxu0 0.0
  %2360 = vmatpush1.msra.mxu0 0.0
  %2361 = vmatprep.subr.mxu0 0.0
  %2362 = vmatpush1.msra.mxu0 0.0
  %2363 = vmatprep.subr.mxu0 0.0
  %2364 = vmatpush1.msra.mxu0 0.0
  %2365 = vmatprep.subr.mxu0 0.0
  %2366 = vmatpush1.msra.mxu0 0.0
  %2367 = vmatprep.subr.mxu0 0.0
  %2368 = vmatpush1.msra.mxu0 0.0
  %2369 = vmatprep.subr.mxu0 0.0
  %2370 = vmatpush1.msra.mxu0 0.0
  %2371 = vmatprep.subr.mxu0 0.0
  %2372 = vmatpush1.msra.mxu0 0.0
  %2373 = vmatprep.subr.mxu0 0.0
  %2374 = vmatpush1.msra.mxu0 0.0
  %2375 = vmatprep.subr.mxu0 0.0
  %2376 = vmatpush1.msra.mxu0 0.0
  %2377 = vmatprep.subr.mxu0 0.0
  %2378 = vmatpush1.msra.mxu0 0.0
  %2379 = vmatprep.subr.mxu0 0.0
  %2380 = vmatpush1.msra.mxu0 0.0
  %2381 = vmatprep.subr.mxu0 0.0
  %2382 = vmatpush1.msra.mxu0 0.0
  %2383 = vmatprep.subr.mxu0 0.0
  %2384 = vmatpush1.msra.mxu0 0.0
  %2385 = vmatprep.subr.mxu0 0.0
  %2386 = vmatpush1.msra.mxu0 0.0
  %2387 = vmatprep.subr.mxu0 0.0
  %2388 = vmatpush1.msra.mxu0 0.0
  %2389 = vmatprep.subr.mxu0 0.0
  %2390 = vmatpush1.msra.mxu0 0.0
  %2391 = vmatprep.subr.mxu0 0.0
  %2392 = vmatpush1.msra.mxu0 0.0
  %2393 = vmatprep.subr.mxu0 0.0
  %2394 = vmatpush1.msra.mxu0 0.0
  %2395 = vmatprep.subr.mxu0 0.0
  %2396 = vmatpush1.msra.mxu0 0.0
  %2397 = vmatprep.subr.mxu0 0.0
  %2398 = vmatpush1.msra.mxu0 0.0
  %2399 = vmatprep.subr.mxu0 0.0
  %2400 = vmatpush1.msra.mxu0 0.0
  %2401 = vmatprep.subr.mxu0 0.0
  %2402 = vmatpush1.msra.mxu0 0.0
  %2403 = vmatprep.subr.mxu0 0.0
  %2404 = vmatpush1.msra.mxu0 0.0
  %2405 = vmatprep.subr.mxu0 0.0
  %2406 = vmatpush1.msra.mxu0 0.0
  %2407 = vmatprep.subr.mxu0 0.0
  %2408 = vmatpush1.msra.mxu0 0.0
  %2409 = vmatprep.subr.mxu0 0.0
  %2410 = vmatpush1.msra.mxu0 0.0
  %2411 = vmatprep.subr.mxu0 0.0
  %2412 = vmatpush1.msra.mxu0 0.0
  %2413 = vmatprep.subr.mxu0 0.0
  %2414 = vmatpush1.msra.mxu0 0.0
  %2415 = vmatprep.subr.mxu0 0.0
  %2416 = vmatpush1.msra.mxu0 0.0
  %2417 = vmatprep.subr.mxu0 0.0
  %2418 = vmatpush1.msra.mxu0 0.0
  %2419 = vmatprep.mubr.f32.mxu0 0.0
  %2420 = vmatmul.mubr.f32.gmra.mrb[0].mxu0 %v2210
  %v2421 = vpop.f32.mrb[0].mxu0
  %v2422 = vadd.f32 0.0, %v2421
  %v2423 = vpop.f32.mrb[0].mxu0
  %v2424 = vadd.f32 0.0, %v2423
  %2425 = vmatprep.mubr.f32.mxu0 0.0
  %2426 = vmatmul.mubr.f32.gmra.mrb[0].mxu0 %v2213
  %v2427 = vpop.f32.mrb[0].mxu0
  %v2428 = vadd.f32 0.0, %v2427
  %v2429 = vpop.f32.mrb[0].mxu0
  %v2430 = vadd.f32 0.0, %v2429
  %2431 = vmatprep.mubr.f32.mxu0 0.0
  %2432 = vmatmul.mubr.f32.gmra.mrb[0].mxu0 %v2216
  %v2433 = vpop.f32.mrb[0].mxu0
  %v2434 = vadd.f32 0.0, %v2433
  %v2435 = vpop.f32.mrb[0].mxu0
  %v2436 = vadd.f32 0.0, %v2435
  %2437 = vmatprep.mubr.f32.mxu0 0.0
  %2438 = vmatmul.mubr.f32.gmra.mrb[0].mxu0 %v2219
  %v2439 = vpop.f32.mrb[0].mxu0
  %v2440 = vadd.f32 0.0, %v2439
  %v2441 = vpop.f32.mrb[0].mxu0
  %v2442 = vadd.f32 0.0, %v2441
  %2443 = vmatprep.mubr.f32.mxu0 0.0
  %2444 = vmatmul.mubr.f32.gmra.mrb[0].mxu0 %v2222
  %v2445 = vpop.f32.mrb[0].mxu0
  %v2446 = vadd.f32 0.0, %v2445
  %v2447 = vpop.f32.mrb[0].mxu0
  %v2448 = vadd.f32 0.0, %v2447
  %2449 = vmatprep.mubr.f32.mxu0 0.0
  %2450 = vmatmul.mubr.f32.gmra.mrb[0].mxu0 %v2225
  %v2451 = vpop.f32.mrb[0].mxu0
  %v2452 = vadd.f32 0.0, %v2451
  %v2453 = vpop.f32.mrb[0].mxu0
  %v2454 = vadd.f32 0.0, %v2453
  %2455 = vmatprep.mubr.f32.mxu0 0.0
  %2456 = vmatmul.mubr.f32.gmra.mrb[0].mxu0 %v2228
  %v2457 = vpop.f32.mrb[0].mxu0
  %v2458 = vadd.f32 0.0, %v2457
  %v2459 = vpop.f32.mrb[0].mxu0
  %v2460 = vadd.f32 0.0, %v2459
  %2461 = vmatprep.mubr.f32.mxu0 0.0
  %2462 = vmatmul.mubr.f32.gmra.mrb[0].mxu0 %v2231
  %v2463 = vpop.f32.mrb[0].mxu0
  %v2464 = vadd.f32 0.0, %v2463
  %v2465 = vpop.f32.mrb[0].mxu0
  %v2466 = vadd.f32 0.0, %v2465
  %2467 = vmatprep.mubr.f32.mxu0 0.0
  %2468 = vmatmul.mubr.f32.gmra.mrb[0].mxu0 %v2234
  %v2469 = vpop.f32.mrb[0].mxu0
  %v2470 = vadd.f32 0.0, %v2469
  %v2471 = vpop.f32.mrb[0].mxu0
  %v2472 = vadd.f32 0.0, %v2471
  %2473 = vdwg.mxu0
  %2474 = vst [vmem:[#allocation2 + $0x8] sm:$0xff] %v2303
  %2475 = vst [vmem:[#allocation2 + $0x10] sm:$0xff] %v2305
  %2476 = vst [vmem:[#allocation2 + $0x18] sm:$0xff] %v2422
  %2477 = vst [vmem:[#allocation2 + $0x20] sm:$0xff] %v2424
  %2478 = vst [vmem:[#allocation2 + $0x38] sm:$0xff] %v2309
  %2479 = vst [vmem:[#allocation2 + $0x40] sm:$0xff] %v2311
  %2480 = vst [vmem:[#allocation2 + $0x48] sm:$0xff] %v2428
  %2481 = vst [vmem:[#allocation2 + $0x50] sm:$0xff] %v2430
  %2482 = vst [vmem:[#allocation2 + $0x68] sm:$0xff] %v2315
  %2483 = vst [vmem:[#allocation2 + $0x70] sm:$0xff] %v2317
  %2484 = vst [vmem:[#allocation2 + $0x78] sm:$0xff] %v2434
  %2485 = vst [vmem:[#allocation2 + $0x80] sm:$0xff] %v2436
  %2486 = vst [vmem:[#allocation2 + $0x98] sm:$0xff] %v2321
  %2487 = vst [vmem:[#allocation2 + $0xa0] sm:$0xff] %v2323
  %2488 = vst [vmem:[#allocation2 + $0xa8] sm:$0xff] %v2440
  %2489 = vst [vmem:[#allocation2 + $0xb0] sm:$0xff] %v2442
  %2490 = vst [vmem:[#allocation2 + $0xc8] sm:$0xff] %v2327
  %2491 = vst [vmem:[#allocation2 + $0xd0] sm:$0xff] %v2329
  %2492 = vst [vmem:[#allocation2 + $0xd8] sm:$0xff] %v2446
  %2493 = vst [vmem:[#allocation2 + $0xe0] sm:$0xff] %v2448
  %2494 = vst [vmem:[#allocation2 + $0xf8] sm:$0xff] %v2333
  %2495 = vst [vmem:[#allocation2 + $0x100] sm:$0xff] %v2335
  %2496 = vst [vmem:[#allocation2 + $0x108] sm:$0xff] %v2452
  %2497 = vst [vmem:[#allocation2 + $0x110] sm:$0xff] %v2454
  %2498 = vst [vmem:[#allocation2 + $0x128] sm:$0xff] %v2339
  %2499 = vst [vmem:[#allocation2 + $0x130] sm:$0xff] %v2341
  %2500 = vst [vmem:[#allocation2 + $0x138] sm:$0xff] %v2458
  %2501 = vst [vmem:[#allocation2 + $0x140] sm:$0xff] %v2460
  %2502 = vst [vmem:[#allocation2 + $0x158] sm:$0xff] %v2345
  %2503 = vst [vmem:[#allocation2 + $0x160] sm:$0xff] %v2347
  %2504 = vst [vmem:[#allocation2 + $0x168] sm:$0xff] %v2464
  %2505 = vst [vmem:[#allocation2 + $0x170] sm:$0xff] %v2466
  %2506 = vst [vmem:[#allocation2 + $0x188] sm:$0xff] %v2351
  %2507 = vst [vmem:[#allocation2 + $0x190] sm:$0xff] %v2353
  %2508 = vst [vmem:[#allocation2 + $0x198] sm:$0xff] %v2470
  %2509 = vst [vmem:[#allocation2 + $0x1a0] sm:$0xff] %v2472
  %v2510 = vld [vmem:[#allocation2] sm:$0xff]
  %v2511 = vld [vmem:[#allocation2 + $0x8] sm:$0xff]
  %v2512 = vld [vmem:[#allocation2 + $0x10] sm:$0xff]
  %v2513 = vld [vmem:[#allocation2 + $0x18] sm:$0xff]
  %v2514 = vld [vmem:[#allocation2 + $0x20] sm:$0xff]
  %v2515 = vmul.f32 %v2510, %v1461
  %v2516 = vmul.f32 %v2511, %v1469
  %v2517 = vmul.f32 %v2512, %v1470
  %v2518 = vmul.f32 %v2513, %v1471
  %v2519 = vmul.f32 %v2514, %v1467
  %v2520 = vadd.f32 %v2515, 0.0
  %v2521 = vadd.f32 %v2516, 0.0
  %v2522 = vadd.f32 %v2517, 0.0
  %v2523 = vadd.f32 %v2518, 0.0
  %v2524 = vadd.f32 %v2519, 0.0
  %v2525 = vld [vmem:[#allocation2 + $0x30] sm:$0xff]
  %v2526 = vld [vmem:[#allocation2 + $0x38] sm:$0xff]
  %v2527 = vld [vmem:[#allocation2 + $0x40] sm:$0xff]
  %v2528 = vld [vmem:[#allocation2 + $0x48] sm:$0xff]
  %v2529 = vld [vmem:[#allocation2 + $0x50] sm:$0xff]
  %v2530 = vmul.f32 %v2525, %v1513
  %v2531 = vmul.f32 %v2526, %v1521
  %v2532 = vmul.f32 %v2527, %v1522
  %v2533 = vmul.f32 %v2528, %v1523
  %v2534 = vmul.f32 %v2529, %v1519
  %2540 = vrot.lane.b32.xlu0 %v2530, 127
  %v2541 = vpop.permute.xlu0 %2540
  %2542 = vrot.lane.b32.xlu0 %v2531, 127
  %v2543 = vpop.permute.xlu0 %2542
  %2544 = vrot.lane.b32.xlu0 %v2532, 127
  %v2545 = vpop.permute.xlu0 %2544
  %2546 = vrot.lane.b32.xlu0 %v2533, 127
  %v2547 = vpop.permute.xlu0 %2546
  %2548 = vrot.lane.b32.xlu0 %v2534, 127
  %v2549 = vpop.permute.xlu0 %2548
  %v2550 = vsel %vm1549, %v2541, %v2543
  %v2551 = vsel %vm1549, %v2543, %v2545
  %v2552 = vsel %vm1549, %v2545, %v2547
  %v2553 = vsel %vm1549, %v2547, %v2549
  %v2559 = vadd.f32 %v2520, %v2550
  %v2560 = vadd.f32 %v2521, %v2551
  %v2561 = vadd.f32 %v2522, %v2552
  %v2562 = vadd.f32 %v2523, %v2553
  %v2563 = vadd.f32 %v2524, %v2549
  %v2564 = vld [vmem:[#allocation2 + $0x60] sm:$0xff]
  %v2565 = vld [vmem:[#allocation2 + $0x68] sm:$0xff]
  %v2566 = vld [vmem:[#allocation2 + $0x70] sm:$0xff]
  %v2567 = vld [vmem:[#allocation2 + $0x78] sm:$0xff]
  %v2568 = vld [vmem:[#allocation2 + $0x80] sm:$0xff]
  %v2569 = vmul.f32 %v2564, %v1590
  %v2570 = vmul.f32 %v2565, %v1598
  %v2571 = vmul.f32 %v2566, %v1599
  %v2572 = vmul.f32 %v2567, %v1600
  %v2573 = vmul.f32 %v2568, %v1596
  %2579 = vrot.lane.b32.xlu0 %v2569, 126
  %v2580 = vpop.permute.xlu0 %2579
  %2581 = vrot.lane.b32.xlu0 %v2570, 126
  %v2582 = vpop.permute.xlu0 %2581
  %2583 = vrot.lane.b32.xlu0 %v2571, 126
  %v2584 = vpop.permute.xlu0 %2583
  %2585 = vrot.lane.b32.xlu0 %v2572, 126
  %v2586 = vpop.permute.xlu0 %2585
  %2587 = vrot.lane.b32.xlu0 %v2573, 126
  %v2588 = vpop.permute.xlu0 %2587
  %v2589 = vsel %vm1626, %v2580, %v2582
  %v2590 = vsel %vm1626, %v2582, %v2584
  %v2591 = vsel %vm1626, %v2584, %v2586
  %v2592 = vsel %vm1626, %v2586, %v2588
  %v2598 = vadd.f32 %v2559, %v2589
  %v2599 = vadd.f32 %v2560, %v2590
  %v2600 = vadd.f32 %v2561, %v2591
  %v2601 = vadd.f32 %v2562, %v2592
  %v2602 = vadd.f32 %v2563, %v2588
  %v2603 = vld [vmem:[#allocation2 + $0x90] sm:$0xff]
  %v2604 = vld [vmem:[#allocation2 + $0x98] sm:$0xff]
  %v2605 = vld [vmem:[#allocation2 + $0xa0] sm:$0xff]
  %v2606 = vld [vmem:[#allocation2 + $0xa8] sm:$0xff]
  %v2607 = vld [vmem:[#allocation2 + $0xb0] sm:$0xff]
  %v2608 = vmul.f32 %v2603, %v1667
  %v2609 = vmul.f32 %v2604, %v1674
  %v2610 = vmul.f32 %v2605, %v1675
  %v2611 = vmul.f32 %v2606, %v1676
  %v2612 = vmul.f32 %v2607, %v1673
  %2618 = vrot.lane.b32.xlu0 %v2608, 112
  %v2619 = vpop.permute.xlu0 %2618
  %2620 = vrot.lane.b32.xlu0 %v2609, 112
  %v2621 = vpop.permute.xlu0 %2620
  %2622 = vrot.lane.b32.xlu0 %v2610, 112
  %v2623 = vpop.permute.xlu0 %2622
  %2624 = vrot.lane.b32.xlu0 %v2611, 112
  %v2625 = vpop.permute.xlu0 %2624
  %2626 = vrot.lane.b32.xlu0 %v2612, 112
  %v2627 = vpop.permute.xlu0 %2626
  %v2628 = vsel %vm1520, %v2619, %v2621
  %v2629 = vsel %vm1520, %v2621, %v2623
  %v2630 = vsel %vm1520, %v2623, %v2625
  %v2631 = vsel %vm1520, %v2625, %v2627
  %v2637 = vadd.f32 %v2598, %v2628
  %v2638 = vadd.f32 %v2599, %v2629
  %v2639 = vadd.f32 %v2600, %v2630
  %v2640 = vadd.f32 %v2601, %v2631
  %v2641 = vadd.f32 %v2602, %v2627
  %v2642 = vld [vmem:[#allocation2 + $0xc8] sm:$0xff]
  %v2643 = vld [vmem:[#allocation2 + $0xd0] sm:$0xff]
  %v2644 = vld [vmem:[#allocation2 + $0xd8] sm:$0xff]
  %v2645 = vld [vmem:[#allocation2 + $0xe0] sm:$0xff]
  %v2646 = vmul.f32 %v2642, %v1723
  %v2647 = vmul.f32 %v2643, %v1727
  %v2648 = vmul.f32 %v2644, %v1731
  %v2649 = vmul.f32 %v2645, %v1735
  %2654 = vrot.lane.b32.xlu0 %v2646, 111
  %v2655 = vpop.permute.xlu0 %2654
  %2656 = vrot.lane.b32.xlu0 %v2647, 111
  %v2657 = vpop.permute.xlu0 %2656
  %2658 = vrot.lane.b32.xlu0 %v2648, 111
  %v2659 = vpop.permute.xlu0 %2658
  %2660 = vrot.lane.b32.xlu0 %v2649, 111
  %v2661 = vpop.permute.xlu0 %2660
  %v2662 = vsel %vm1468, %v2655, %v2657
  %v2663 = vsel %vm1468, %v2657, %v2659
  %v2664 = vsel %vm1468, %v2659, %v2661
  %v2670 = vadd.f32 %v2637, %v2655
  %v2671 = vadd.f32 %v2638, %v2662
  %v2672 = vadd.f32 %v2639, %v2663
  %v2673 = vadd.f32 %v2640, %v2664
  %v2674 = vadd.f32 %v2641, %v2661
  %v2675 = vld [vmem:[#allocation2 + $0xf8] sm:$0xff]
  %v2676 = vld [vmem:[#allocation2 + $0x100] sm:$0xff]
  %v2677 = vld [vmem:[#allocation2 + $0x108] sm:$0xff]
  %v2678 = vld [vmem:[#allocation2 + $0x110] sm:$0xff]
  %v2679 = vld [vmem:[#allocation2 + $0x118] sm:$0xff]
  %v2680 = vmul.f32 %v2675, %v1791
  %v2681 = vmul.f32 %v2676, %v1799
  %v2682 = vmul.f32 %v2677, %v1800
  %v2683 = vmul.f32 %v2678, %v1801
  %v2684 = vmul.f32 %v2679, %v1797
  %2690 = vrot.lane.b32.xlu0 %v2680, 110
  %v2691 = vpop.permute.xlu0 %2690
  %2692 = vrot.lane.b32.xlu0 %v2681, 110
  %v2693 = vpop.permute.xlu0 %2692
  %2694 = vrot.lane.b32.xlu0 %v2682, 110
  %v2695 = vpop.permute.xlu0 %2694
  %2696 = vrot.lane.b32.xlu0 %v2683, 110
  %v2697 = vpop.permute.xlu0 %2696
  %2698 = vrot.lane.b32.xlu0 %v2684, 110
  %v2699 = vpop.permute.xlu0 %2698
  %v2700 = vsel %vm1827, %v2691, %v2693
  %v2701 = vsel %vm1827, %v2693, %v2695
  %v2702 = vsel %vm1827, %v2695, %v2697
  %v2703 = vsel %vm1827, %v2697, %v2699
  %v2709 = vadd.f32 %v2670, %v2691
  %v2710 = vadd.f32 %v2671, %v2700
  %v2711 = vadd.f32 %v2672, %v2701
  %v2712 = vadd.f32 %v2673, %v2702
  %v2713 = vadd.f32 %v2674, %v2703
  %v2714 = vld [vmem:[#allocation2 + $0x128] sm:$0xff]
  %v2715 = vld [vmem:[#allocation2 + $0x130] sm:$0xff]
  %v2716 = vld [vmem:[#allocation2 + $0x138] sm:$0xff]
  %v2717 = vld [vmem:[#allocation2 + $0x140] sm:$0xff]
  %v2718 = vld [vmem:[#allocation2 + $0x148] sm:$0xff]
  %v2719 = vmul.f32 %v2714, %v1868
  %v2720 = vmul.f32 %v2715, %v1876
  %v2721 = vmul.f32 %v2716, %v1877
  %v2722 = vmul.f32 %v2717, %v1878
  %v2723 = vmul.f32 %v2718, %v1874
  %2729 = vrot.lane.b32.xlu0 %v2719, 96
  %v2730 = vpop.permute.xlu0 %2729
  %2731 = vrot.lane.b32.xlu0 %v2720, 96
  %v2732 = vpop.permute.xlu0 %2731
  %2733 = vrot.lane.b32.xlu0 %v2721, 96
  %v2734 = vpop.permute.xlu0 %2733
  %2735 = vrot.lane.b32.xlu0 %v2722, 96
  %v2736 = vpop.permute.xlu0 %2735
  %2737 = vrot.lane.b32.xlu0 %v2723, 96
  %v2738 = vpop.permute.xlu0 %2737
  %v2739 = vsel %vm1904, %v2730, %v2732
  %v2740 = vsel %vm1904, %v2732, %v2734
  %v2741 = vsel %vm1904, %v2734, %v2736
  %v2742 = vsel %vm1904, %v2736, %v2738
  %v2748 = vadd.f32 %v2709, %v2730
  %v2749 = vadd.f32 %v2710, %v2739
  %v2750 = vadd.f32 %v2711, %v2740
  %v2751 = vadd.f32 %v2712, %v2741
  %v2752 = vadd.f32 %v2713, %v2742
  %v2753 = vld [vmem:[#allocation2 + $0x158] sm:$0xff]
  %v2754 = vld [vmem:[#allocation2 + $0x160] sm:$0xff]
  %v2755 = vld [vmem:[#allocation2 + $0x168] sm:$0xff]
  %v2756 = vld [vmem:[#allocation2 + $0x170] sm:$0xff]
  %v2757 = vld [vmem:[#allocation2 + $0x178] sm:$0xff]
  %v2758 = vmul.f32 %v2753, %v1945
  %v2759 = vmul.f32 %v2754, %v1953
  %v2760 = vmul.f32 %v2755, %v1954
  %v2761 = vmul.f32 %v2756, %v1955
  %v2762 = vmul.f32 %v2757, %v1951
  %2768 = vrot.lane.b32.xlu0 %v2758, 95
  %v2769 = vpop.permute.xlu0 %2768
  %2770 = vrot.lane.b32.xlu0 %v2759, 95
  %v2771 = vpop.permute.xlu0 %2770
  %2772 = vrot.lane.b32.xlu0 %v2760, 95
  %v2773 = vpop.permute.xlu0 %2772
  %2774 = vrot.lane.b32.xlu0 %v2761, 95
  %v2775 = vpop.permute.xlu0 %2774
  %2776 = vrot.lane.b32.xlu0 %v2762, 95
  %v2777 = vpop.permute.xlu0 %2776
  %v2778 = vsel %vm1981, %v2769, %v2771
  %v2779 = vsel %vm1981, %v2771, %v2773
  %v2780 = vsel %vm1981, %v2773, %v2775
  %v2781 = vsel %vm1981, %v2775, %v2777
  %v2787 = vadd.f32 %v2748, %v2769
  %v2788 = vadd.f32 %v2749, %v2778
  %v2789 = vadd.f32 %v2750, %v2779
  %v2790 = vadd.f32 %v2751, %v2780
  %v2791 = vadd.f32 %v2752, %v2781
  %v2792 = vld [vmem:[#allocation2 + $0x188] sm:$0xff]
  %v2793 = vld [vmem:[#allocation2 + $0x190] sm:$0xff]
  %v2794 = vld [vmem:[#allocation2 + $0x198] sm:$0xff]
  %v2795 = vld [vmem:[#allocation2 + $0x1a0] sm:$0xff]
  %v2796 = vld [vmem:[#allocation2 + $0x1a8] sm:$0xff]
  %v2797 = vmul.f32 %v2792, %v2022
  %v2798 = vmul.f32 %v2793, %v2030
  %v2799 = vmul.f32 %v2794, %v2031
  %v2800 = vmul.f32 %v2795, %v2032
  %v2801 = vmul.f32 %v2796, %v2028
  %2807 = vrot.lane.b32.xlu0 %v2797, 94
  %v2808 = vpop.permute.xlu0 %2807
  %2809 = vrot.lane.b32.xlu0 %v2798, 94
  %v2810 = vpop.permute.xlu0 %2809
  %2811 = vrot.lane.b32.xlu0 %v2799, 94
  %v2812 = vpop.permute.xlu0 %2811
  %2813 = vrot.lane.b32.xlu0 %v2800, 94
  %v2814 = vpop.permute.xlu0 %2813
  %2815 = vrot.lane.b32.xlu0 %v2801, 94
  %v2816 = vpop.permute.xlu0 %2815
  %v2817 = vsel %vm2058, %v2808, %v2810
  %v2818 = vsel %vm2058, %v2810, %v2812
  %v2819 = vsel %vm2058, %v2812, %v2814
  %v2820 = vsel %vm2058, %v2814, %v2816
  %v2826 = vadd.f32 %v2787, %v2808
  %v2827 = vadd.f32 %v2788, %v2817
  %v2828 = vadd.f32 %v2789, %v2818
  %v2829 = vadd.f32 %v2790, %v2819
  %v2830 = vadd.f32 %v2791, %v2820
  %2831 = vset.pattern.permute.xlu0 2
  %2832 = vperm.xlu0 %2831, %v37
  %v2833 = vpop.permute.xlu0 %2832
  %v2835 = vadd.f32 %v2826, %v2833
  %v2836 = vadd.f32 %v2827, %v2833
  %v2837 = vadd.f32 %v2828, %v2833
  %v2838 = vadd.f32 %v2829, %v2833
  %v2839 = vadd.f32 %v2830, %v2833
  %2845 = vrot.lane.b32.xlu0 %v2835, 17
  %v2846 = vpop.permute.xlu0 %2845
  %2847 = vrot.lane.b32.xlu0 %v2836, 17
  %v2848 = vpop.permute.xlu0 %2847
  %2849 = vrot.lane.b32.xlu0 %v2837, 17
  %v2850 = vpop.permute.xlu0 %2849
  %2851 = vrot.lane.b32.xlu0 %v2838, 17
  %v2852 = vpop.permute.xlu0 %2851
  %2853 = vrot.lane.b32.xlu0 %v2839, 17
  %v2854 = vpop.permute.xlu0 %2853
  %v2855 = vsel %vm2029, %v2846, %v2848
  %v2856 = vsel %vm2029, %v2848, %v2850
  %v2857 = vsel %vm2029, %v2850, %v2852
  %v2858 = vsel %vm2029, %v2852, %v2854
  %v2863 = vadd.f32 %v2855, %v2856
  %v2864 = vadd.f32 %v2863, %v2857
  %v2865 = vadd.f32 %v2864, %v2858
  %2866 = vadd.xlane.f32.xlu0 %v2865
  %v2867 = vpop.xlane.xlu0 %2866
  %v2868 = vmul.f32 %v2867, 0.001953125
  %v2869 = vsub.f32 %v2835, %v2868
  %v2870 = vsub.f32 %v2836, %v2868
  %v2871 = vsub.f32 %v2837, %v2868
  %v2872 = vsub.f32 %v2838, %v2868
  %v2873 = vsub.f32 %v2839, %v2868
  %v2874 = vmul.f32 %v2869, %v2869
  %v2875 = vmul.f32 %v2870, %v2870
  %v2876 = vmul.f32 %v2871, %v2871
  %v2877 = vmul.f32 %v2872, %v2872
  %v2878 = vmul.f32 %v2873, %v2873
  %2884 = vrot.lane.b32.xlu0 %v2874, 17
  %v2885 = vpop.permute.xlu0 %2884
  %2886 = vrot.lane.b32.xlu0 %v2875, 17
  %v2887 = vpop.permute.xlu0 %2886
  %2888 = vrot.lane.b32.xlu0 %v2876, 17
  %v2889 = vpop.permute.xlu0 %2888
  %2890 = vrot.lane.b32.xlu0 %v2877, 17
  %v2891 = vpop.permute.xlu0 %2890
  %2892 = vrot.lane.b32.xlu0 %v2878, 17
  %v2893 = vpop.permute.xlu0 %2892
  %v2894 = vsel %vm2029, %v2885, %v2887
  %v2895 = vsel %vm2029, %v2887, %v2889
  %v2896 = vsel %vm2029, %v2889, %v2891
  %v2897 = vsel %vm2029, %v2891, %v2893
  %v2902 = vadd.f32 %v2894, %v2895
  %v2903 = vadd.f32 %v2902, %v2896
  %v2904 = vadd.f32 %v2903, %v2897
  %2905 = vadd.xlane.f32.xlu0 %v2904
  %v2906 = vpop.xlane.xlu0 %2905
  %v2907 = vmul.f32 %v2906, 0.001953125
  %v2908 = vadd.f32 %v2907, 1e-05
  %v2909 = vrsqrt.pop %v2908
  %v2910 = vmul.f32 %v37, %v2909
  %2912 = vset.pattern.permute.xlu0 5
  %2913 = vperm.xlu0 %2912, %v2910
  %v2914 = vpop.permute.xlu0 %2913
  %v2916 = vmul.f32 %v2869, %v2914
  %v2917 = vmul.f32 %v2870, %v2914
  %v2918 = vmul.f32 %v2871, %v2914
  %v2919 = vmul.f32 %v2872, %v2914
  %v2920 = vmul.f32 %v2873, %v2914
  %2921 = vset.pattern.permute.xlu0 6
  %2922 = vperm.xlu0 %2921, %v37
  %v2923 = vpop.permute.xlu0 %2922
  %v2925 = vadd.f32 %v2916, %v2923
  %v2926 = vadd.f32 %v2917, %v2923
  %v2927 = vadd.f32 %v2918, %v2923
  %v2928 = vadd.f32 %v2919, %v2923
  %v2929 = vadd.f32 %v2920, %v2923
  %v2930 = vmax.f32 %v2925, 0.0
  %v2931 = vmax.f32 %v2926, 0.0
  %v2932 = vmax.f32 %v2927, 0.0
  %v2933 = vmax.f32 %v2928, 0.0
  %v2934 = vmax.f32 %v2929, 0.0
  %2940 = vrot.lane.b32.xlu0 %v2930, 17
  %v2941 = vpop.permute.xlu0 %2940
  %2942 = vrot.lane.b32.xlu0 %v2931, 17
  %v2943 = vpop.permute.xlu0 %2942
  %2944 = vrot.lane.b32.xlu0 %v2932, 17
  %v2945 = vpop.permute.xlu0 %2944
  %2946 = vrot.lane.b32.xlu0 %v2933, 17
  %v2947 = vpop.permute.xlu0 %2946
  %2948 = vrot.lane.b32.xlu0 %v2934, 17
  %v2949 = vpop.permute.xlu0 %2948
  %v2950 = vsel %vm2029, %v2941, %v2943
  %v2951 = vsel %vm2029, %v2943, %v2945
  %v2952 = vsel %vm2029, %v2945, %v2947
  %v2953 = vsel %vm2029, %v2947, %v2949
  %2958 = vst [vmem:[%s8] sm:$0xff] %v2950
  %2959 = vst [vmem:[%s8 + $0x8] sm:$0xff] %v2951
  %2960 = vst [vmem:[%s8 + $0x10] sm:$0xff] %v2952
  %2961 = vst [vmem:[%s8 + $0x18] sm:$0xff] %v2953
  // Predicated region
  $region34: #{_lambda_.1} parent=0 // pred_check
    _
  $region35: #{_lambda_.1} parent=0 // pred_check_branch
    %2963 = sbr.rel (0) target = $region37
  $region36: #{_lambda_.1} parent=0 // pred_region
    _
  $region37: #{_lambda_.1} parent=0 // pred_fallthru
    _
  // Predicated region
  $region38: #{_lambda_.1} parent=0 // pred_check
    _
  $region39: #{_lambda_.1} parent=0 // pred_check_branch
    %2965 = sbr.rel (0) target = $region41
  $region40: #{_lambda_.1} parent=0 // pred_region
    _
  $region41: #{_lambda_.1} parent=0 // pred_fallthru
    _

</llo_original>
